<compile_context>
chip_gen: v5e
topology: v5e:2x2
jax: 0.10.0
libtpu: 0.0.40
codegen_flags: <defaults>
</compile_context>

<pallas_src>
import functools

import numpy as np
import jax
import jax.numpy as jnp
from jax.experimental import pallas as pl
from jax.experimental.pallas import tpu as pltpu

# Depthwise tap offsets in the same order the (3,3,C) weights flatten: t = kh*3+kw.
_OFFS = [(dh, dw) for dh in (-1, 0, 1) for dw in (-1, 0, 1)]


# ---------------------------------------------------------------------------
# The single fused Pallas kernel (runs once per image).
# ---------------------------------------------------------------------------
def _ltd_fused_kernel(p_ref, m1_ref, w1_ref, b1_ref, wd1_ref, b2_ref,
                      wp1_ref, b3_ref, wd2_ref, b4_ref, wp2_ref, b5_ref,
                      o_ref, *, h2, w2, h3, w3):
    f32 = jnp.float32
    bf16 = jnp.bfloat16

    def relu(v):
        return jnp.maximum(v, 0.0)

    g = h2 * w2  # kept conv1 positions per dw1 tap (8x8 = 64)

    # Stage 1: ConvBNReLU(3->C1, 3x3, s2, p0) as one MXU matmul on the
    # pre-gathered im2col patches (BN scale folded into w1, K padded 27->32,
    # bf16 inputs, f32 accumulate).  mask1 implements dw1's zero padding for
    # rows whose conv1 position falls outside the conv1 output grid.
    a1 = relu(jnp.dot(p_ref[0], w1_ref[...], preferred_element_type=f32)
              + b1_ref[...])
    a1 = a1 * m1_ref[...]                                   # (9*g, C1)

    # Stage 2: depthwise 3x3 + BN + ReLU (its stride-2 AND the following
    # pointwise's stride-2 already folded into the gathered position set):
    # 9 aligned g-row slices, shift-and-add on the VPU -- no gather matmul.
    wd1 = wd1_ref[...]
    acc1 = a1[0:g, :] * wd1[0:1, :]
    for t in range(1, 9):
        acc1 = acc1 + a1[t * g:(t + 1) * g, :] * wd1[t:t + 1, :]
    a2 = relu(acc1 + b2_ref[...])                           # (g, C1)

    # Stage 3: pointwise 1x1 + BN + ReLU (stride folded into the position set).
    a3 = relu(jnp.dot(a2.astype(bf16), wp1_ref[...],
                      preferred_element_type=f32) + b3_ref[...])    # (g, C2)

    # Stage 4: second depthwise + BN + ReLU, fused with pw2's stride-2: only
    # <= 9*h3*w3 (tap, position) pairs exist, each reading one distinct row of
    # a3 -- static single-row slices, out-of-range taps skipped at trace time.
    wd2 = wd2_ref[...]
    rows = []
    for p3 in range(h3 * w3):
        oh3, ow3 = p3 // w3, p3 % w3
        acc = None
        for t, (dh, dw) in enumerate(_OFFS):
            qa, qb = 4 * oh3 + dh, 4 * ow3 + dw
            if 0 <= qa < h2 and 0 <= qb < w2:
                r = qa * w2 + qb
                term = a3[r:r + 1, :] * wd2[t:t + 1, :]
                acc = term if acc is None else acc + term
        rows.append(acc)
    a4 = relu(jnp.concatenate(rows, axis=0) + b4_ref[...])  # (h3*w3, C2)

    # Stage 5: final pointwise + BN + ReLU.
    y = relu(jnp.dot(a4.astype(bf16), wp2_ref[...],
                     preferred_element_type=f32) + b5_ref[...])      # (h3*w3, C3)
    o_ref[0] = y


# ---------------------------------------------------------------------------
# Forward pass: NCHW in/out, one fused pallas_call, grid over the batch.
# ---------------------------------------------------------------------------
@jax.jit
def learning_to_downsample(x_nchw, params):
    n, cin, H, W = x_nchw.shape
    assert cin == 3
    x = jnp.transpose(x_nchw, (0, 2, 3, 1)).astype(jnp.float32)      # NHWC

    c1 = params["conv1_w"].shape[-1]
    c2 = params["pw1_w"].shape[-1]
    c3 = params["pw2_w"].shape[-1]

    # Static spatial bookkeeping (stride applied to depthwise AND pointwise).
    h1, w1 = (H - 3) // 2 + 1, (W - 3) // 2 + 1         # conv1 (3x3 s2 p0)
    h2f, w2f = (h1 - 1) // 2 + 1, (w1 - 1) // 2 + 1     # dw1   (3x3 s2 p1)
    h2, w2 = (h2f - 1) // 2 + 1, (w2f - 1) // 2 + 1     # pw1   (1x1 s2)
    h3f, w3f = (h2 - 1) // 2 + 1, (w2 - 1) // 2 + 1     # dw2   (3x3 s2 p1)
    h3, w3 = (h3f - 1) // 2 + 1, (w3f - 1) // 2 + 1     # pw2   (1x1 s2)

    # Kept conv1 positions sit at stride-8 offsets in the raw image
    # (2 px per conv1 step x effective stride-4 on the conv1 grid); a 2-px
    # top/left zero pad covers the dh/dw = -1 taps.
    assert 8 * h2 <= H + 3 and 8 * w2 <= W + 3

    # --- gathered im2col: per dw1 tap, the conv1 patches of exactly the kept
    # positions; built with vectorized strided slices only (no XLA gather). ---
    xp = jnp.pad(x, ((0, 0), (2, 0), (2, 0), (0, 0)))
    groups, mask_parts = [], []
    for dh, dw in _OFFS:
        pieces = []
        for kh in range(3):
            r0 = 2 * dh + kh + 2
            rws = xp[:, r0:r0 + 8 * (h2 - 1) + 1:8, :, :]            # (n,h2,*,3)
            for kw in range(3):
                c0 = 2 * dw + kw + 2
                pieces.append(rws[:, :, c0:c0 + 8 * (w2 - 1) + 1:8, :])
        groups.append(jnp.stack(pieces, axis=-2).reshape(n, h2 * w2, 27))
        vh = ((4 * np.arange(h2) + dh) >= 0) & ((4 * np.arange(h2) + dh) < h1)
        vw = ((4 * np.arange(w2) + dw) >= 0) & ((4 * np.arange(w2) + dw) < w1)
        mask_parts.append(np.outer(vh, vw).astype(np.float32).reshape(-1))
    kpad = 32                                            # 27 -> 32 (lane/MXU-friendlier K)
    p = jnp.concatenate(groups, axis=1).astype(jnp.bfloat16)
    p = jnp.pad(p, ((0, 0), (0, 0), (0, kpad - 27)))     # (n, 9*h2*w2, 32) bf16
    m1 = jnp.asarray(np.concatenate(mask_parts).reshape(-1, 1))
    L1 = 9 * h2 * w2

    # --- BN-folded weights: bf16 for the MXU matmuls, f32 for VPU epilogues. ---
    w1m = (params["conv1_w"] * params["bn1_scale"]).reshape(-1, c1)
    w1m = jnp.pad(w1m, ((0, kpad - 27), (0, 0))).astype(jnp.bfloat16)
    b1 = params["bn1_shift"].reshape(1, c1)
    wd1 = (params["dw1_w"] * params["bn2_scale"]).reshape(9, c1)
    b2 = params["bn2_shift"].reshape(1, c1)
    wp1 = (params["pw1_w"] * params["bn3_scale"]).astype(jnp.bfloat16)
    b3 = params["bn3_shift"].reshape(1, c2)
    wd2 = (params["dw2_w"] * params["bn4_scale"]).reshape(9, c2)
    b4 = params["bn4_shift"].reshape(1, c2)
    wp2 = (params["pw2_w"] * params["bn5_scale"]).astype(jnp.bfloat16)
    b5 = params["bn5_shift"].reshape(1, c3)

    kernel = functools.partial(_ltd_fused_kernel, h2=h2, w2=w2, h3=h3, w3=w3)

    def rep(a):  # whole-array (replicated) block; not re-fetched across steps
        return pl.BlockSpec(a.shape, lambda i: (0,) * a.ndim)

    out = pl.pallas_call(
        kernel,
        out_shape=jax.ShapeDtypeStruct((n, h3 * w3, c3), jnp.float32),
        grid=(n,),
        in_specs=[
            pl.BlockSpec((1, L1, kpad), lambda i: (i, 0, 0)),
            rep(m1), rep(w1m), rep(b1), rep(wd1), rep(b2),
            rep(wp1), rep(b3), rep(wd2), rep(b4), rep(wp2), rep(b5),
        ],
        out_specs=pl.BlockSpec((1, h3 * w3, c3), lambda i: (i, 0, 0)),
        compiler_params=pltpu.CompilerParams(
            dimension_semantics=("parallel",)),
    )(p, m1, w1m, b1, wd1, b2, wp1, b3, wd2, b4, wp2, b5)

    out = out.reshape(n, h3, w3, c3)
    return jnp.transpose(out, (0, 3, 1, 2))               # NHWC -> NCHW


# ---------------------------------------------------------------------------
# Deterministic synthetic parameters (BN pre-folded into scale/shift).
# ---------------------------------------------------------------------------
def init_params(key, dw_channels1=32, dw_channels2=48, out_channels=64):
    keys = jax.random.split(key, 10)

    def bn(k, c, eps=1e-5):
        k1, k2, k3, k4 = jax.random.split(k, 4)
        gamma = 1.0 + 0.1 * jax.random.normal(k1, (c,), jnp.float32)
        beta = 0.1 * jax.random.normal(k2, (c,), jnp.float32)
        mean = 0.1 * jax.random.normal(k3, (c,), jnp.float32)
        var = jax.random.uniform(k4, (c,), jnp.float32, 0.5, 1.5)
        scale = gamma / jnp.sqrt(var + eps)
        shift = beta - mean * scale
        return scale, shift

    p = {}
    p["conv1_w"] = 0.1 * jax.random.normal(keys[0], (3, 3, 3, dw_channels1), jnp.float32)
    p["bn1_scale"], p["bn1_shift"] = bn(keys[1], dw_channels1)
    p["dw1_w"] = 0.1 * jax.random.normal(keys[2], (3, 3, dw_channels1), jnp.float32)
    p["bn2_scale"], p["bn2_shift"] = bn(keys[3], dw_channels1)
    p["pw1_w"] = 0.1 * jax.random.normal(keys[4], (dw_channels1, dw_channels2), jnp.float32)
    p["bn3_scale"], p["bn3_shift"] = bn(keys[5], dw_channels2)
    p["dw2_w"] = 0.1 * jax.random.normal(keys[6], (3, 3, dw_channels2), jnp.float32)
    p["bn4_scale"], p["bn4_shift"] = bn(keys[7], dw_channels2)
    p["pw2_w"] = 0.1 * jax.random.normal(keys[8], (dw_channels2, out_channels), jnp.float32)
    p["bn5_scale"], p["bn5_shift"] = bn(keys[9], out_channels)
    return p


# ---------------------------------------------------------------------------
# Pure-JAX reference (lax convs) for a numerical self-check.
# ---------------------------------------------------------------------------
@jax.jit
def reference_ltd(x_nchw, p):
    hp = jax.lax.Precision.HIGHEST
    x = jnp.transpose(x_nchw, (0, 2, 3, 1)).astype(jnp.float32)

    def conv(x, w, stride, pad, groups=1):
        return jax.lax.conv_general_dilated(
            x, w, (stride, stride), ((pad, pad), (pad, pad)),
            dimension_numbers=("NHWC", "HWIO", "NHWC"),
            feature_group_count=groups, precision=hp)

    def bnrelu(x, scale, shift):
        return jnp.maximum(x * scale + shift, 0.0)

    c1 = p["conv1_w"].shape[-1]
    c2 = p["pw1_w"].shape[-1]
    x = bnrelu(conv(x, p["conv1_w"], 2, 0), p["bn1_scale"], p["bn1_shift"])
    x = bnrelu(conv(x, p["dw1_w"].reshape(3, 3, 1, c1), 2, 1, groups=c1),
               p["bn2_scale"], p["bn2_shift"])
    x = bnrelu(conv(x, p["pw1_w"][None, None], 2, 0), p["bn3_scale"], p["bn3_shift"])
    x = bnrelu(conv(x, p["dw2_w"].reshape(3, 3, 1, c2), 2, 1, groups=c2),
               p["bn4_scale"], p["bn4_shift"])
    x = bnrelu(conv(x, p["pw2_w"][None, None], 2, 0), p["bn5_scale"], p["bn5_shift"])
    return jnp.transpose(x, (0, 3, 1, 2))


if __name__ == "__main__":
    key = jax.random.PRNGKey(0)
    pkey, xkey = jax.random.split(key)
    params = init_params(pkey)
    # NCHW input: 3 channels required by the first conv; 64x64 spatial gives the
    # full five stride-2 stages: 64 -> 31 -> 16 -> 8 -> 4 -> 2.
    x = jax.random.normal(xkey, (2, 3, 64, 64), jnp.float32)

    out = learning_to_downsample(x, params)
    jax.block_until_ready(out)
    assert out.shape == (2, 64, 2, 2), out.shape
    assert bool(jnp.all(jnp.isfinite(out)))

    ref = reference_ltd(x, params)
    jax.block_until_ready(ref)
    np.testing.assert_allclose(np.asarray(out), np.asarray(ref), rtol=2e-2, atol=2e-2)

    print("KERNEL_OK")
</pallas_src>

<mosaic_0001>
module attributes {stable_mosaic.version = 11 : i64} {
  func.func @_ltd_fused_kernel(%arg0: i32, %arg1: memref<1x576x32xbf16, #tpu.memory_space<vmem>>, %arg2: memref<576x1xf32, #tpu.memory_space<vmem>>, %arg3: memref<32x32xbf16, #tpu.memory_space<vmem>>, %arg4: memref<1x32xf32, #tpu.memory_space<vmem>>, %arg5: memref<9x32xf32, #tpu.memory_space<vmem>>, %arg6: memref<1x32xf32, #tpu.memory_space<vmem>>, %arg7: memref<32x48xbf16, #tpu.memory_space<vmem>>, %arg8: memref<1x48xf32, #tpu.memory_space<vmem>>, %arg9: memref<9x48xf32, #tpu.memory_space<vmem>>, %arg10: memref<1x48xf32, #tpu.memory_space<vmem>>, %arg11: memref<48x64xbf16, #tpu.memory_space<vmem>>, %arg12: memref<1x64xf32, #tpu.memory_space<vmem>>, %arg13: memref<1x4x64xf32, #tpu.memory_space<vmem>>) attributes {dimension_semantics = [#tpu.dimension_semantics<parallel>], iteration_bounds = array<i64: 2>, scalar_prefetch = 0 : i64, scratch_operands = 0 : i64, tpu.core_type = #tpu.core_type<tc>, window_params = [{transform_indices = @transform_0, window_bounds = array<i64: 1, 576, 32>}, {pipeline_mode = #tpu.pipeline_mode<synchronous>, transform_indices = @transform_1, window_bounds = array<i64: 576, 1>}, {pipeline_mode = #tpu.pipeline_mode<synchronous>, transform_indices = @transform_2, window_bounds = array<i64: 32, 32>}, {pipeline_mode = #tpu.pipeline_mode<synchronous>, transform_indices = @transform_3, window_bounds = array<i64: 1, 32>}, {pipeline_mode = #tpu.pipeline_mode<synchronous>, transform_indices = @transform_4, window_bounds = array<i64: 9, 32>}, {pipeline_mode = #tpu.pipeline_mode<synchronous>, transform_indices = @transform_5, window_bounds = array<i64: 1, 32>}, {pipeline_mode = #tpu.pipeline_mode<synchronous>, transform_indices = @transform_6, window_bounds = array<i64: 32, 48>}, {pipeline_mode = #tpu.pipeline_mode<synchronous>, transform_indices = @transform_7, window_bounds = array<i64: 1, 48>}, {pipeline_mode = #tpu.pipeline_mode<synchronous>, transform_indices = @transform_8, window_bounds = array<i64: 9, 48>}, {pipeline_mode = #tpu.pipeline_mode<synchronous>, transform_indices = @transform_9, window_bounds = array<i64: 1, 48>}, {pipeline_mode = #tpu.pipeline_mode<synchronous>, transform_indices = @transform_10, window_bounds = array<i64: 48, 64>}, {pipeline_mode = #tpu.pipeline_mode<synchronous>, transform_indices = @transform_11, window_bounds = array<i64: 1, 64>}, {transform_indices = @transform_12, window_bounds = array<i64: 1, 4, 64>}]} {
    %c0 = arith.constant 0 : index
    %c0_0 = arith.constant 0 : index
    %c0_1 = arith.constant 0 : index
    %0 = vector.load %arg1[%c0, %c0_0, %c0_1] : memref<1x576x32xbf16, #tpu.memory_space<vmem>>, vector<1x576x32xbf16>
    %1 = vector.shape_cast %0 : vector<1x576x32xbf16> to vector<576x32xbf16>
    %c0_2 = arith.constant 0 : index
    %c0_3 = arith.constant 0 : index
    %2 = vector.load %arg3[%c0_2, %c0_3] : memref<32x32xbf16, #tpu.memory_space<vmem>>, vector<32x32xbf16>
    %cst = arith.constant dense<0.000000e+00> : vector<576x32xf32>
    %3 = tpu.matmul %1, %2, %cst {dimension_numbers = #tpu.dot_dimension_numbers<[1], [0], [0], [1], [0, 0, 1, 1], [], []>} : vector<576x32xbf16>, vector<32x32xbf16>, vector<576x32xf32> -> vector<576x32xf32>
    %c0_4 = arith.constant 0 : index
    %c0_5 = arith.constant 0 : index
    %4 = vector.load %arg4[%c0_4, %c0_5] : memref<1x32xf32, #tpu.memory_space<vmem>>, vector<1x32xf32>
    %5 = vector.broadcast %4 : vector<1x32xf32> to vector<576x32xf32>
    %6 = arith.addf %3, %5 : vector<576x32xf32>
    %cst_6 = arith.constant 0.000000e+00 : f32
    %7 = vector.broadcast %cst_6 : f32 to vector<576x32xf32>
    %8 = arith.maximumf %6, %7 : vector<576x32xf32>
    %c0_7 = arith.constant 0 : index
    %c0_8 = arith.constant 0 : index
    %9 = vector.load %arg2[%c0_7, %c0_8] : memref<576x1xf32, #tpu.memory_space<vmem>>, vector<576x1xf32>
    %10 = vector.broadcast %9 : vector<576x1xf32> to vector<576x32xf32>
    %11 = arith.mulf %8, %10 : vector<576x32xf32>
    %c0_9 = arith.constant 0 : index
    %c0_10 = arith.constant 0 : index
    %12 = vector.load %arg5[%c0_9, %c0_10] : memref<9x32xf32, #tpu.memory_space<vmem>>, vector<9x32xf32>
    %13 = vector.extract_strided_slice %11 {offsets = [0, 0], sizes = [64, 32], strides = [1, 1]} : vector<576x32xf32> to vector<64x32xf32>
    %14 = vector.extract_strided_slice %12 {offsets = [0, 0], sizes = [1, 32], strides = [1, 1]} : vector<9x32xf32> to vector<1x32xf32>
    %15 = vector.broadcast %14 : vector<1x32xf32> to vector<64x32xf32>
    %16 = arith.mulf %13, %15 : vector<64x32xf32>
    %17 = vector.extract_strided_slice %11 {offsets = [64, 0], sizes = [64, 32], strides = [1, 1]} : vector<576x32xf32> to vector<64x32xf32>
    %18 = vector.extract_strided_slice %12 {offsets = [1, 0], sizes = [1, 32], strides = [1, 1]} : vector<9x32xf32> to vector<1x32xf32>
    %19 = vector.broadcast %18 : vector<1x32xf32> to vector<64x32xf32>
    %20 = arith.mulf %17, %19 : vector<64x32xf32>
    %21 = arith.addf %16, %20 : vector<64x32xf32>
    %22 = vector.extract_strided_slice %11 {offsets = [128, 0], sizes = [64, 32], strides = [1, 1]} : vector<576x32xf32> to vector<64x32xf32>
    %23 = vector.extract_strided_slice %12 {offsets = [2, 0], sizes = [1, 32], strides = [1, 1]} : vector<9x32xf32> to vector<1x32xf32>
    %24 = vector.broadcast %23 : vector<1x32xf32> to vector<64x32xf32>
    %25 = arith.mulf %22, %24 : vector<64x32xf32>
    %26 = arith.addf %21, %25 : vector<64x32xf32>
    %27 = vector.extract_strided_slice %11 {offsets = [192, 0], sizes = [64, 32], strides = [1, 1]} : vector<576x32xf32> to vector<64x32xf32>
    %28 = vector.extract_strided_slice %12 {offsets = [3, 0], sizes = [1, 32], strides = [1, 1]} : vector<9x32xf32> to vector<1x32xf32>
    %29 = vector.broadcast %28 : vector<1x32xf32> to vector<64x32xf32>
    %30 = arith.mulf %27, %29 : vector<64x32xf32>
    %31 = arith.addf %26, %30 : vector<64x32xf32>
    %32 = vector.extract_strided_slice %11 {offsets = [256, 0], sizes = [64, 32], strides = [1, 1]} : vector<576x32xf32> to vector<64x32xf32>
    %33 = vector.extract_strided_slice %12 {offsets = [4, 0], sizes = [1, 32], strides = [1, 1]} : vector<9x32xf32> to vector<1x32xf32>
    %34 = vector.broadcast %33 : vector<1x32xf32> to vector<64x32xf32>
    %35 = arith.mulf %32, %34 : vector<64x32xf32>
    %36 = arith.addf %31, %35 : vector<64x32xf32>
    %37 = vector.extract_strided_slice %11 {offsets = [320, 0], sizes = [64, 32], strides = [1, 1]} : vector<576x32xf32> to vector<64x32xf32>
    %38 = vector.extract_strided_slice %12 {offsets = [5, 0], sizes = [1, 32], strides = [1, 1]} : vector<9x32xf32> to vector<1x32xf32>
    %39 = vector.broadcast %38 : vector<1x32xf32> to vector<64x32xf32>
    %40 = arith.mulf %37, %39 : vector<64x32xf32>
    %41 = arith.addf %36, %40 : vector<64x32xf32>
    %42 = vector.extract_strided_slice %11 {offsets = [384, 0], sizes = [64, 32], strides = [1, 1]} : vector<576x32xf32> to vector<64x32xf32>
    %43 = vector.extract_strided_slice %12 {offsets = [6, 0], sizes = [1, 32], strides = [1, 1]} : vector<9x32xf32> to vector<1x32xf32>
    %44 = vector.broadcast %43 : vector<1x32xf32> to vector<64x32xf32>
    %45 = arith.mulf %42, %44 : vector<64x32xf32>
    %46 = arith.addf %41, %45 : vector<64x32xf32>
    %47 = vector.extract_strided_slice %11 {offsets = [448, 0], sizes = [64, 32], strides = [1, 1]} : vector<576x32xf32> to vector<64x32xf32>
    %48 = vector.extract_strided_slice %12 {offsets = [7, 0], sizes = [1, 32], strides = [1, 1]} : vector<9x32xf32> to vector<1x32xf32>
    %49 = vector.broadcast %48 : vector<1x32xf32> to vector<64x32xf32>
    %50 = arith.mulf %47, %49 : vector<64x32xf32>
    %51 = arith.addf %46, %50 : vector<64x32xf32>
    %52 = vector.extract_strided_slice %11 {offsets = [512, 0], sizes = [64, 32], strides = [1, 1]} : vector<576x32xf32> to vector<64x32xf32>
    %53 = vector.extract_strided_slice %12 {offsets = [8, 0], sizes = [1, 32], strides = [1, 1]} : vector<9x32xf32> to vector<1x32xf32>
    %54 = vector.broadcast %53 : vector<1x32xf32> to vector<64x32xf32>
    %55 = arith.mulf %52, %54 : vector<64x32xf32>
    %56 = arith.addf %51, %55 : vector<64x32xf32>
    %c0_11 = arith.constant 0 : index
    %c0_12 = arith.constant 0 : index
    %57 = vector.load %arg6[%c0_11, %c0_12] : memref<1x32xf32, #tpu.memory_space<vmem>>, vector<1x32xf32>
    %58 = vector.broadcast %57 : vector<1x32xf32> to vector<64x32xf32>
    %59 = arith.addf %56, %58 : vector<64x32xf32>
    %cst_13 = arith.constant 0.000000e+00 : f32
    %60 = vector.broadcast %cst_13 : f32 to vector<64x32xf32>
    %61 = arith.maximumf %59, %60 : vector<64x32xf32>
    %62 = arith.truncf %61 : vector<64x32xf32> to vector<64x32xbf16>
    %c0_14 = arith.constant 0 : index
    %c0_15 = arith.constant 0 : index
    %63 = vector.load %arg7[%c0_14, %c0_15] : memref<32x48xbf16, #tpu.memory_space<vmem>>, vector<32x48xbf16>
    %cst_16 = arith.constant dense<0.000000e+00> : vector<64x48xf32>
    %64 = tpu.matmul %62, %63, %cst_16 {dimension_numbers = #tpu.dot_dimension_numbers<[1], [0], [0], [1], [0, 0, 1, 1], [], []>} : vector<64x32xbf16>, vector<32x48xbf16>, vector<64x48xf32> -> vector<64x48xf32>
    %c0_17 = arith.constant 0 : index
    %c0_18 = arith.constant 0 : index
    %65 = vector.load %arg8[%c0_17, %c0_18] : memref<1x48xf32, #tpu.memory_space<vmem>>, vector<1x48xf32>
    %66 = vector.broadcast %65 : vector<1x48xf32> to vector<64x48xf32>
    %67 = arith.addf %64, %66 : vector<64x48xf32>
    %cst_19 = arith.constant 0.000000e+00 : f32
    %68 = vector.broadcast %cst_19 : f32 to vector<64x48xf32>
    %69 = arith.maximumf %67, %68 : vector<64x48xf32>
    %c0_20 = arith.constant 0 : index
    %c0_21 = arith.constant 0 : index
    %70 = vector.load %arg9[%c0_20, %c0_21] : memref<9x48xf32, #tpu.memory_space<vmem>>, vector<9x48xf32>
    %71 = vector.extract_strided_slice %69 {offsets = [0, 0], sizes = [1, 48], strides = [1, 1]} : vector<64x48xf32> to vector<1x48xf32>
    %72 = vector.extract_strided_slice %70 {offsets = [4, 0], sizes = [1, 48], strides = [1, 1]} : vector<9x48xf32> to vector<1x48xf32>
    %73 = arith.mulf %71, %72 : vector<1x48xf32>
    %74 = vector.extract_strided_slice %69 {offsets = [1, 0], sizes = [1, 48], strides = [1, 1]} : vector<64x48xf32> to vector<1x48xf32>
    %75 = vector.extract_strided_slice %70 {offsets = [5, 0], sizes = [1, 48], strides = [1, 1]} : vector<9x48xf32> to vector<1x48xf32>
    %76 = arith.mulf %74, %75 : vector<1x48xf32>
    %77 = arith.addf %73, %76 : vector<1x48xf32>
    %78 = vector.extract_strided_slice %69 {offsets = [8, 0], sizes = [1, 48], strides = [1, 1]} : vector<64x48xf32> to vector<1x48xf32>
    %79 = vector.extract_strided_slice %70 {offsets = [7, 0], sizes = [1, 48], strides = [1, 1]} : vector<9x48xf32> to vector<1x48xf32>
    %80 = arith.mulf %78, %79 : vector<1x48xf32>
    %81 = arith.addf %77, %80 : vector<1x48xf32>
    %82 = vector.extract_strided_slice %69 {offsets = [9, 0], sizes = [1, 48], strides = [1, 1]} : vector<64x48xf32> to vector<1x48xf32>
    %83 = vector.extract_strided_slice %70 {offsets = [8, 0], sizes = [1, 48], strides = [1, 1]} : vector<9x48xf32> to vector<1x48xf32>
    %84 = arith.mulf %82, %83 : vector<1x48xf32>
    %85 = arith.addf %81, %84 : vector<1x48xf32>
    %86 = vector.extract_strided_slice %69 {offsets = [3, 0], sizes = [1, 48], strides = [1, 1]} : vector<64x48xf32> to vector<1x48xf32>
    %87 = vector.extract_strided_slice %70 {offsets = [3, 0], sizes = [1, 48], strides = [1, 1]} : vector<9x48xf32> to vector<1x48xf32>
    %88 = arith.mulf %86, %87 : vector<1x48xf32>
    %89 = vector.extract_strided_slice %69 {offsets = [4, 0], sizes = [1, 48], strides = [1, 1]} : vector<64x48xf32> to vector<1x48xf32>
    %90 = vector.extract_strided_slice %70 {offsets = [4, 0], sizes = [1, 48], strides = [1, 1]} : vector<9x48xf32> to vector<1x48xf32>
    %91 = arith.mulf %89, %90 : vector<1x48xf32>
    %92 = arith.addf %88, %91 : vector<1x48xf32>
    %93 = vector.extract_strided_slice %69 {offsets = [5, 0], sizes = [1, 48], strides = [1, 1]} : vector<64x48xf32> to vector<1x48xf32>
    %94 = vector.extract_strided_slice %70 {offsets = [5, 0], sizes = [1, 48], strides = [1, 1]} : vector<9x48xf32> to vector<1x48xf32>
    %95 = arith.mulf %93, %94 : vector<1x48xf32>
    %96 = arith.addf %92, %95 : vector<1x48xf32>
    %97 = vector.extract_strided_slice %69 {offsets = [11, 0], sizes = [1, 48], strides = [1, 1]} : vector<64x48xf32> to vector<1x48xf32>
    %98 = vector.extract_strided_slice %70 {offsets = [6, 0], sizes = [1, 48], strides = [1, 1]} : vector<9x48xf32> to vector<1x48xf32>
    %99 = arith.mulf %97, %98 : vector<1x48xf32>
    %100 = arith.addf %96, %99 : vector<1x48xf32>
    %101 = vector.extract_strided_slice %69 {offsets = [12, 0], sizes = [1, 48], strides = [1, 1]} : vector<64x48xf32> to vector<1x48xf32>
    %102 = vector.extract_strided_slice %70 {offsets = [7, 0], sizes = [1, 48], strides = [1, 1]} : vector<9x48xf32> to vector<1x48xf32>
    %103 = arith.mulf %101, %102 : vector<1x48xf32>
    %104 = arith.addf %100, %103 : vector<1x48xf32>
    %105 = vector.extract_strided_slice %69 {offsets = [13, 0], sizes = [1, 48], strides = [1, 1]} : vector<64x48xf32> to vector<1x48xf32>
    %106 = vector.extract_strided_slice %70 {offsets = [8, 0], sizes = [1, 48], strides = [1, 1]} : vector<9x48xf32> to vector<1x48xf32>
    %107 = arith.mulf %105, %106 : vector<1x48xf32>
    %108 = arith.addf %104, %107 : vector<1x48xf32>
    %109 = vector.extract_strided_slice %69 {offsets = [24, 0], sizes = [1, 48], strides = [1, 1]} : vector<64x48xf32> to vector<1x48xf32>
    %110 = vector.extract_strided_slice %70 {offsets = [1, 0], sizes = [1, 48], strides = [1, 1]} : vector<9x48xf32> to vector<1x48xf32>
    %111 = arith.mulf %109, %110 : vector<1x48xf32>
    %112 = vector.extract_strided_slice %69 {offsets = [25, 0], sizes = [1, 48], strides = [1, 1]} : vector<64x48xf32> to vector<1x48xf32>
    %113 = vector.extract_strided_slice %70 {offsets = [2, 0], sizes = [1, 48], strides = [1, 1]} : vector<9x48xf32> to vector<1x48xf32>
    %114 = arith.mulf %112, %113 : vector<1x48xf32>
    %115 = arith.addf %111, %114 : vector<1x48xf32>
    %116 = vector.extract_strided_slice %69 {offsets = [32, 0], sizes = [1, 48], strides = [1, 1]} : vector<64x48xf32> to vector<1x48xf32>
    %117 = vector.extract_strided_slice %70 {offsets = [4, 0], sizes = [1, 48], strides = [1, 1]} : vector<9x48xf32> to vector<1x48xf32>
    %118 = arith.mulf %116, %117 : vector<1x48xf32>
    %119 = arith.addf %115, %118 : vector<1x48xf32>
    %120 = vector.extract_strided_slice %69 {offsets = [33, 0], sizes = [1, 48], strides = [1, 1]} : vector<64x48xf32> to vector<1x48xf32>
    %121 = vector.extract_strided_slice %70 {offsets = [5, 0], sizes = [1, 48], strides = [1, 1]} : vector<9x48xf32> to vector<1x48xf32>
    %122 = arith.mulf %120, %121 : vector<1x48xf32>
    %123 = arith.addf %119, %122 : vector<1x48xf32>
    %124 = vector.extract_strided_slice %69 {offsets = [40, 0], sizes = [1, 48], strides = [1, 1]} : vector<64x48xf32> to vector<1x48xf32>
    %125 = vector.extract_strided_slice %70 {offsets = [7, 0], sizes = [1, 48], strides = [1, 1]} : vector<9x48xf32> to vector<1x48xf32>
    %126 = arith.mulf %124, %125 : vector<1x48xf32>
    %127 = arith.addf %123, %126 : vector<1x48xf32>
    %128 = vector.extract_strided_slice %69 {offsets = [41, 0], sizes = [1, 48], strides = [1, 1]} : vector<64x48xf32> to vector<1x48xf32>
    %129 = vector.extract_strided_slice %70 {offsets = [8, 0], sizes = [1, 48], strides = [1, 1]} : vector<9x48xf32> to vector<1x48xf32>
    %130 = arith.mulf %128, %129 : vector<1x48xf32>
    %131 = arith.addf %127, %130 : vector<1x48xf32>
    %132 = vector.extract_strided_slice %69 {offsets = [27, 0], sizes = [1, 48], strides = [1, 1]} : vector<64x48xf32> to vector<1x48xf32>
    %133 = vector.extract_strided_slice %70 {offsets = [0, 0], sizes = [1, 48], strides = [1, 1]} : vector<9x48xf32> to vector<1x48xf32>
    %134 = arith.mulf %132, %133 : vector<1x48xf32>
    %135 = vector.extract_strided_slice %69 {offsets = [28, 0], sizes = [1, 48], strides = [1, 1]} : vector<64x48xf32> to vector<1x48xf32>
    %136 = vector.extract_strided_slice %70 {offsets = [1, 0], sizes = [1, 48], strides = [1, 1]} : vector<9x48xf32> to vector<1x48xf32>
    %137 = arith.mulf %135, %136 : vector<1x48xf32>
    %138 = arith.addf %134, %137 : vector<1x48xf32>
    %139 = vector.extract_strided_slice %69 {offsets = [29, 0], sizes = [1, 48], strides = [1, 1]} : vector<64x48xf32> to vector<1x48xf32>
    %140 = vector.extract_strided_slice %70 {offsets = [2, 0], sizes = [1, 48], strides = [1, 1]} : vector<9x48xf32> to vector<1x48xf32>
    %141 = arith.mulf %139, %140 : vector<1x48xf32>
    %142 = arith.addf %138, %141 : vector<1x48xf32>
    %143 = vector.extract_strided_slice %69 {offsets = [35, 0], sizes = [1, 48], strides = [1, 1]} : vector<64x48xf32> to vector<1x48xf32>
    %144 = vector.extract_strided_slice %70 {offsets = [3, 0], sizes = [1, 48], strides = [1, 1]} : vector<9x48xf32> to vector<1x48xf32>
    %145 = arith.mulf %143, %144 : vector<1x48xf32>
    %146 = arith.addf %142, %145 : vector<1x48xf32>
    %147 = vector.extract_strided_slice %69 {offsets = [36, 0], sizes = [1, 48], strides = [1, 1]} : vector<64x48xf32> to vector<1x48xf32>
    %148 = vector.extract_strided_slice %70 {offsets = [4, 0], sizes = [1, 48], strides = [1, 1]} : vector<9x48xf32> to vector<1x48xf32>
    %149 = arith.mulf %147, %148 : vector<1x48xf32>
    %150 = arith.addf %146, %149 : vector<1x48xf32>
    %151 = vector.extract_strided_slice %69 {offsets = [37, 0], sizes = [1, 48], strides = [1, 1]} : vector<64x48xf32> to vector<1x48xf32>
    %152 = vector.extract_strided_slice %70 {offsets = [5, 0], sizes = [1, 48], strides = [1, 1]} : vector<9x48xf32> to vector<1x48xf32>
    %153 = arith.mulf %151, %152 : vector<1x48xf32>
    %154 = arith.addf %150, %153 : vector<1x48xf32>
    %155 = vector.extract_strided_slice %69 {offsets = [43, 0], sizes = [1, 48], strides = [1, 1]} : vector<64x48xf32> to vector<1x48xf32>
    %156 = vector.extract_strided_slice %70 {offsets = [6, 0], sizes = [1, 48], strides = [1, 1]} : vector<9x48xf32> to vector<1x48xf32>
    %157 = arith.mulf %155, %156 : vector<1x48xf32>
    %158 = arith.addf %154, %157 : vector<1x48xf32>
    %159 = vector.extract_strided_slice %69 {offsets = [44, 0], sizes = [1, 48], strides = [1, 1]} : vector<64x48xf32> to vector<1x48xf32>
    %160 = vector.extract_strided_slice %70 {offsets = [7, 0], sizes = [1, 48], strides = [1, 1]} : vector<9x48xf32> to vector<1x48xf32>
    %161 = arith.mulf %159, %160 : vector<1x48xf32>
    %162 = arith.addf %158, %161 : vector<1x48xf32>
    %163 = vector.extract_strided_slice %69 {offsets = [45, 0], sizes = [1, 48], strides = [1, 1]} : vector<64x48xf32> to vector<1x48xf32>
    %164 = vector.extract_strided_slice %70 {offsets = [8, 0], sizes = [1, 48], strides = [1, 1]} : vector<9x48xf32> to vector<1x48xf32>
    %165 = arith.mulf %163, %164 : vector<1x48xf32>
    %166 = arith.addf %162, %165 : vector<1x48xf32>
    %167 = tpu.concatenate %85, %108, %131, %166 in 0 : vector<1x48xf32>, vector<1x48xf32>, vector<1x48xf32>, vector<1x48xf32> -> vector<4x48xf32>
    %c0_22 = arith.constant 0 : index
    %c0_23 = arith.constant 0 : index
    %168 = vector.load %arg10[%c0_22, %c0_23] : memref<1x48xf32, #tpu.memory_space<vmem>>, vector<1x48xf32>
    %169 = vector.broadcast %168 : vector<1x48xf32> to vector<4x48xf32>
    %170 = arith.addf %167, %169 : vector<4x48xf32>
    %cst_24 = arith.constant 0.000000e+00 : f32
    %171 = vector.broadcast %cst_24 : f32 to vector<4x48xf32>
    %172 = arith.maximumf %170, %171 : vector<4x48xf32>
    %173 = arith.truncf %172 : vector<4x48xf32> to vector<4x48xbf16>
    %c0_25 = arith.constant 0 : index
    %c0_26 = arith.constant 0 : index
    %174 = vector.load %arg11[%c0_25, %c0_26] : memref<48x64xbf16, #tpu.memory_space<vmem>>, vector<48x64xbf16>
    %cst_27 = arith.constant dense<0.000000e+00> : vector<4x64xf32>
    %175 = tpu.matmul %173, %174, %cst_27 {dimension_numbers = #tpu.dot_dimension_numbers<[1], [0], [0], [1], [0, 0, 1, 1], [], []>} : vector<4x48xbf16>, vector<48x64xbf16>, vector<4x64xf32> -> vector<4x64xf32>
    %c0_28 = arith.constant 0 : index
    %c0_29 = arith.constant 0 : index
    %176 = vector.load %arg12[%c0_28, %c0_29] : memref<1x64xf32, #tpu.memory_space<vmem>>, vector<1x64xf32>
    %177 = vector.broadcast %176 : vector<1x64xf32> to vector<4x64xf32>
    %178 = arith.addf %175, %177 : vector<4x64xf32>
    %cst_30 = arith.constant 0.000000e+00 : f32
    %179 = vector.broadcast %cst_30 : f32 to vector<4x64xf32>
    %180 = arith.maximumf %178, %179 : vector<4x64xf32>
    %c0_31 = arith.constant 0 : index
    %c0_32 = arith.constant 0 : index
    %c0_33 = arith.constant 0 : index
    %181 = vector.load %arg13[%c0_31, %c0_32, %c0_33] : memref<1x4x64xf32, #tpu.memory_space<vmem>>, vector<1x4x64xf32>
    %182 = vector.shape_cast %181 : vector<1x4x64xf32> to vector<4x64xf32>
    %183 = vector.shape_cast %180 : vector<4x64xf32> to vector<1x4x64xf32>
    tpu.vector_store %arg13[%c0_31, %c0_32, %c0_33], %183 {strides = array<i32>} : memref<1x4x64xf32, #tpu.memory_space<vmem>>, vector<1x4x64xf32>,
    return
  }
  func.func @transform_0(%arg0: i32) -> (i32, i32, i32) {
    %c0_i32 = arith.constant 0 : i32
    %c0_i32_0 = arith.constant 0 : i32
    %c0_i32_1 = arith.constant 0 : i32
    return %arg0, %c0_i32, %c0_i32_0 : i32, i32, i32
  }
  func.func @transform_1(%arg0: i32) -> (i32, i32) {
    %c0_i32 = arith.constant 0 : i32
    %c0_i32_0 = arith.constant 0 : i32
    %c0_i32_1 = arith.constant 0 : i32
    return %c0_i32, %c0_i32_0 : i32, i32
  }
  func.func @transform_2(%arg0: i32) -> (i32, i32) {
    %c0_i32 = arith.constant 0 : i32
    %c0_i32_0 = arith.constant 0 : i32
    %c0_i32_1 = arith.constant 0 : i32
    return %c0_i32, %c0_i32_0 : i32, i32
  }
  func.func @transform_3(%arg0: i32) -> (i32, i32) {
    %c0_i32 = arith.constant 0 : i32
    %c0_i32_0 = arith.constant 0 : i32
    %c0_i32_1 = arith.constant 0 : i32
    return %c0_i32, %c0_i32_0 : i32, i32
  }
  func.func @transform_4(%arg0: i32) -> (i32, i32) {
    %c0_i32 = arith.constant 0 : i32
    %c0_i32_0 = arith.constant 0 : i32
    %c0_i32_1 = arith.constant 0 : i32
    return %c0_i32, %c0_i32_0 : i32, i32
  }
  func.func @transform_5(%arg0: i32) -> (i32, i32) {
    %c0_i32 = arith.constant 0 : i32
    %c0_i32_0 = arith.constant 0 : i32
    %c0_i32_1 = arith.constant 0 : i32
    return %c0_i32, %c0_i32_0 : i32, i32
  }
  func.func @transform_6(%arg0: i32) -> (i32, i32) {
    %c0_i32 = arith.constant 0 : i32
    %c0_i32_0 = arith.constant 0 : i32
    %c0_i32_1 = arith.constant 0 : i32
    return %c0_i32, %c0_i32_0 : i32, i32
  }
  func.func @transform_7(%arg0: i32) -> (i32, i32) {
    %c0_i32 = arith.constant 0 : i32
    %c0_i32_0 = arith.constant 0 : i32
    %c0_i32_1 = arith.constant 0 : i32
    return %c0_i32, %c0_i32_0 : i32, i32
  }
  func.func @transform_8(%arg0: i32) -> (i32, i32) {
    %c0_i32 = arith.constant 0 : i32
    %c0_i32_0 = arith.constant 0 : i32
    %c0_i32_1 = arith.constant 0 : i32
    return %c0_i32, %c0_i32_0 : i32, i32
  }
  func.func @transform_9(%arg0: i32) -> (i32, i32) {
    %c0_i32 = arith.constant 0 : i32
    %c0_i32_0 = arith.constant 0 : i32
    %c0_i32_1 = arith.constant 0 : i32
    return %c0_i32, %c0_i32_0 : i32, i32
  }
  func.func @transform_10(%arg0: i32) -> (i32, i32) {
    %c0_i32 = arith.constant 0 : i32
    %c0_i32_0 = arith.constant 0 : i32
    %c0_i32_1 = arith.constant 0 : i32
    return %c0_i32, %c0_i32_0 : i32, i32
  }
  func.func @transform_11(%arg0: i32) -> (i32, i32) {
    %c0_i32 = arith.constant 0 : i32
    %c0_i32_0 = arith.constant 0 : i32
    %c0_i32_1 = arith.constant 0 : i32
    return %c0_i32, %c0_i32_0 : i32, i32
  }
  func.func @transform_12(%arg0: i32) -> (i32, i32, i32) {
    %c0_i32 = arith.constant 0 : i32
    %c0_i32_0 = arith.constant 0 : i32
    %c0_i32_1 = arith.constant 0 : i32
    return %arg0, %c0_i32, %c0_i32_0 : i32, i32, i32
  }
}

</mosaic_0001>

<llo_original>
// kernel: learning_to_downsample.1
$region0: #{learning_to_downsample.1}
  #allocation0 [shape = 'u32[]', space=smem, size = 0x4, offset = 0x4, fixed_abs, tag = 'smem constant byte address 0x4 - core index']
  #allocation1 [shape = 'u32[72,128]{1,0:T(1,128)}', space=vmem, size = 0x9000, scoped, tag = 'internal scratch']
  %s0 = inlined_call_operand.vmem [shape: bf16[2,576,32], index: 0, kind: input, shape index: {}]
  %s1 = inlined_call_operand.vmem [shape: f32[576,1], index: 1, kind: input, shape index: {}]
  %s2 = inlined_call_operand.vmem [shape: bf16[32,32], index: 2, kind: input, shape index: {}]
  %s3 = inlined_call_operand.vmem [shape: f32[1,32], index: 3, kind: input, shape index: {}]
  %s4 = inlined_call_operand.vmem [shape: f32[9,32], index: 4, kind: input, shape index: {}]
  %s5 = inlined_call_operand.vmem [shape: f32[1,32], index: 5, kind: input, shape index: {}]
  %s6 = inlined_call_operand.vmem [shape: bf16[32,48], index: 6, kind: input, shape index: {}]
  %s7 = inlined_call_operand.vmem [shape: f32[1,48], index: 7, kind: input, shape index: {}]
  %s8 = inlined_call_operand.vmem [shape: f32[9,48], index: 8, kind: input, shape index: {}]
  %s9 = inlined_call_operand.vmem [shape: f32[1,48], index: 9, kind: input, shape index: {}]
  %s10 = inlined_call_operand.vmem [shape: bf16[48,64], index: 10, kind: input, shape index: {}]
  %s11 = inlined_call_operand.vmem [shape: f32[1,64], index: 11, kind: input, shape index: {}]
  %s12 = inlined_call_operand.hbm [shape: f32[2,4,64], index: 12, kind: output, shape index: {}]
  %s13 = sld [smem:[#allocation0]]
  $region81: #{learning_to_downsample.1} parent=0
    _
  %s15 = ssub.s32 1, %s13
  %s16 = scalar_select 0, %s15, %s13
  $region1: #{learning_to_downsample.1} parent=0
    #allocation2 [shape = 'u8[4096]{0}', space=vmem, size = 0x1000, scoped, tag = 'output window, operand 0']
    #allocation3 [shape = 's32[2]{0}', space=sflag, size = 0x8, scoped, tag = 'scoped memory for learning_to_downsample.1']
    %17 = vsyncpa [#allocation3], 0
    %s18 = scalar_lea.sflag [#allocation3], 1
    %19 = vsyncpa %s18, 0
    loop: start=0, step=1, limit=4
    $region2: #{learning_to_downsample.1} parent=1 // loop_pre_header
      _
    $region3: #{learning_to_downsample.1} parent=1 // loop_header
      %s21 = sphi 0, %s25
      %p22 = scmp.ge.s32.totalorder %s21, 4
      %s31 = sphi 0, %s33
      %s34 = sphi 0, %s31
      %s35 = sphi 0, %s34
      %s51 = sphi 0, %s35
      %s55 = sphi 0, %s55
      %s57 = sphi 0, %s55
      %s58 = sphi 0, %s57
      %s72 = sphi 0, %s58
      %s76 = sphi 0, %s76
      %s78 = sphi 0, %s76
      %s79 = sphi 0, %s78
      %s93 = sphi 0, %s79
      %s97 = sphi 0, %s97
      %s99 = sphi 0, %s97
      %s100 = sphi 0, %s99
      %s114 = sphi 0, %s100
      %s118 = sphi 0, %s118
      %s120 = sphi 0, %s118
      %s121 = sphi 0, %s120
      %s135 = sphi 0, %s121
      %s139 = sphi 0, %s139
      %s141 = sphi 0, %s139
      %s142 = sphi 0, %s141
      %s156 = sphi 0, %s142
      %s160 = sphi 0, %s160
      %s162 = sphi 0, %s160
      %s163 = sphi 0, %s162
      %s177 = sphi 0, %s163
      %s181 = sphi 0, %s181
      %s183 = sphi 0, %s181
      %s184 = sphi 0, %s183
      %s198 = sphi 0, %s184
      %s202 = sphi 0, %s202
      %s204 = sphi 0, %s202
      %s205 = sphi 0, %s204
      %s219 = sphi 0, %s205
      %s223 = sphi 0, %s223
      %s225 = sphi 0, %s223
      %s226 = sphi 0, %s225
      %s240 = sphi 0, %s226
      %s244 = sphi 0, %s244
      %s246 = sphi 0, %s244
      %s247 = sphi 0, %s246
      %s261 = sphi 0, %s247
      %s265 = sphi 0, %s265
      %s267 = sphi 0, %s265
      %s268 = sphi 0, %s267
      %s282 = sphi 0, %s268
      %s288 = sphi 0, %s290
      %s291 = sphi 0, %s288
      %s292 = sphi 0, %s291
      %s308 = sphi 0, %s292
    $region4: #{learning_to_downsample.1} parent=1 // loop_header_branch
      %24 = sbr.rel (%p22) target = $region8
    $region5: #{learning_to_downsample.1} parent=1 // loop_body
      %s26 = ssub.s32 %s21, 1
      %s27 = ssub.s32 %s21, 2
      %s28 = sadd.s32 %s21, 1
      %s29 = ssub.s32 %s21, %s28
      %p30 = scmp.eq.s32.totalorder %s29, 0
      %s32 = sadd.s32 %s31, 1
      %s33 = scalar_select %p30, %s31, %s32
      %p36 = pneg %p30
      %p37 = scmp.eq.s32.totalorder %s21, 1
      %p38 = por %p36, %p37
      %p39 = scmp.ne.s32.totalorder %s31, %s34
      %p40 = scmp.eq.s32.totalorder %s21, 0
      %p41 = por %p39, %p40
      %p42 = scmp.ne.s32.totalorder %s31, %s34
      %p43 = scmp.eq.s32.totalorder %s26, 1
      %p44 = por %p42, %p43
      %p45 = scmp.ne.s32.totalorder %s34, %s35
      %p46 = scmp.eq.s32.totalorder %s26, 0
      %p47 = por %p45, %p46
      %p48 = scmp.ne.s32.totalorder %s34, %s35
      %p49 = scmp.eq.s32.totalorder %s27, 1
      %p50 = por %p48, %p49
      %p52 = scmp.ne.s32.totalorder %s35, %s51
      %p53 = scmp.eq.s32.totalorder %s27, 0
      %p54 = por %p52, %p53
      %s56 = sadd.s32 %s55, 1
      %p59 = scmp.eq.s32.totalorder %s21, 1
      %p60 = scmp.ne.s32.totalorder %s55, %s57
      %p61 = scmp.eq.s32.totalorder %s21, 0
      %p62 = por %p60, %p61
      %p63 = scmp.ne.s32.totalorder %s55, %s57
      %p64 = scmp.eq.s32.totalorder %s26, 1
      %p65 = por %p63, %p64
      %p66 = scmp.ne.s32.totalorder %s57, %s58
      %p67 = scmp.eq.s32.totalorder %s26, 0
      %p68 = por %p66, %p67
      %p69 = scmp.ne.s32.totalorder %s57, %s58
      %p70 = scmp.eq.s32.totalorder %s27, 1
      %p71 = por %p69, %p70
      %p73 = scmp.ne.s32.totalorder %s58, %s72
      %p74 = scmp.eq.s32.totalorder %s27, 0
      %p75 = por %p73, %p74
      %s77 = sadd.s32 %s76, 1
      %p80 = scmp.eq.s32.totalorder %s21, 1
      %p81 = scmp.ne.s32.totalorder %s76, %s78
      %p82 = scmp.eq.s32.totalorder %s21, 0
      %p83 = por %p81, %p82
      %p84 = scmp.ne.s32.totalorder %s76, %s78
      %p85 = scmp.eq.s32.totalorder %s26, 1
      %p86 = por %p84, %p85
      %p87 = scmp.ne.s32.totalorder %s78, %s79
      %p88 = scmp.eq.s32.totalorder %s26, 0
      %p89 = por %p87, %p88
      %p90 = scmp.ne.s32.totalorder %s78, %s79
      %p91 = scmp.eq.s32.totalorder %s27, 1
      %p92 = por %p90, %p91
      %p94 = scmp.ne.s32.totalorder %s79, %s93
      %p95 = scmp.eq.s32.totalorder %s27, 0
      %p96 = por %p94, %p95
      %s98 = sadd.s32 %s97, 1
      %p101 = scmp.eq.s32.totalorder %s21, 1
      %p102 = scmp.ne.s32.totalorder %s97, %s99
      %p103 = scmp.eq.s32.totalorder %s21, 0
      %p104 = por %p102, %p103
      %p105 = scmp.ne.s32.totalorder %s97, %s99
      %p106 = scmp.eq.s32.totalorder %s26, 1
      %p107 = por %p105, %p106
      %p108 = scmp.ne.s32.totalorder %s99, %s100
      %p109 = scmp.eq.s32.totalorder %s26, 0
      %p110 = por %p108, %p109
      %p111 = scmp.ne.s32.totalorder %s99, %s100
      %p112 = scmp.eq.s32.totalorder %s27, 1
      %p113 = por %p111, %p112
      %p115 = scmp.ne.s32.totalorder %s100, %s114
      %p116 = scmp.eq.s32.totalorder %s27, 0
      %p117 = por %p115, %p116
      %s119 = sadd.s32 %s118, 1
      %p122 = scmp.eq.s32.totalorder %s21, 1
      %p123 = scmp.ne.s32.totalorder %s118, %s120
      %p124 = scmp.eq.s32.totalorder %s21, 0
      %p125 = por %p123, %p124
      %p126 = scmp.ne.s32.totalorder %s118, %s120
      %p127 = scmp.eq.s32.totalorder %s26, 1
      %p128 = por %p126, %p127
      %p129 = scmp.ne.s32.totalorder %s120, %s121
      %p130 = scmp.eq.s32.totalorder %s26, 0
      %p131 = por %p129, %p130
      %p132 = scmp.ne.s32.totalorder %s120, %s121
      %p133 = scmp.eq.s32.totalorder %s27, 1
      %p134 = por %p132, %p133
      %p136 = scmp.ne.s32.totalorder %s121, %s135
      %p137 = scmp.eq.s32.totalorder %s27, 0
      %p138 = por %p136, %p137
      %s140 = sadd.s32 %s139, 1
      %p143 = scmp.eq.s32.totalorder %s21, 1
      %p144 = scmp.ne.s32.totalorder %s139, %s141
      %p145 = scmp.eq.s32.totalorder %s21, 0
      %p146 = por %p144, %p145
      %p147 = scmp.ne.s32.totalorder %s139, %s141
      %p148 = scmp.eq.s32.totalorder %s26, 1
      %p149 = por %p147, %p148
      %p150 = scmp.ne.s32.totalorder %s141, %s142
      %p151 = scmp.eq.s32.totalorder %s26, 0
      %p152 = por %p150, %p151
      %p153 = scmp.ne.s32.totalorder %s141, %s142
      %p154 = scmp.eq.s32.totalorder %s27, 1
      %p155 = por %p153, %p154
      %p157 = scmp.ne.s32.totalorder %s142, %s156
      %p158 = scmp.eq.s32.totalorder %s27, 0
      %p159 = por %p157, %p158
      %s161 = sadd.s32 %s160, 1
      %p164 = scmp.eq.s32.totalorder %s21, 1
      %p165 = scmp.ne.s32.totalorder %s160, %s162
      %p166 = scmp.eq.s32.totalorder %s21, 0
      %p167 = por %p165, %p166
      %p168 = scmp.ne.s32.totalorder %s160, %s162
      %p169 = scmp.eq.s32.totalorder %s26, 1
      %p170 = por %p168, %p169
      %p171 = scmp.ne.s32.totalorder %s162, %s163
      %p172 = scmp.eq.s32.totalorder %s26, 0
      %p173 = por %p171, %p172
      %p174 = scmp.ne.s32.totalorder %s162, %s163
      %p175 = scmp.eq.s32.totalorder %s27, 1
      %p176 = por %p174, %p175
      %p178 = scmp.ne.s32.totalorder %s163, %s177
      %p179 = scmp.eq.s32.totalorder %s27, 0
      %p180 = por %p178, %p179
      %s182 = sadd.s32 %s181, 1
      %p185 = scmp.eq.s32.totalorder %s21, 1
      %p186 = scmp.ne.s32.totalorder %s181, %s183
      %p187 = scmp.eq.s32.totalorder %s21, 0
      %p188 = por %p186, %p187
      %p189 = scmp.ne.s32.totalorder %s181, %s183
      %p190 = scmp.eq.s32.totalorder %s26, 1
      %p191 = por %p189, %p190
      %p192 = scmp.ne.s32.totalorder %s183, %s184
      %p193 = scmp.eq.s32.totalorder %s26, 0
      %p194 = por %p192, %p193
      %p195 = scmp.ne.s32.totalorder %s183, %s184
      %p196 = scmp.eq.s32.totalorder %s27, 1
      %p197 = por %p195, %p196
      %p199 = scmp.ne.s32.totalorder %s184, %s198
      %p200 = scmp.eq.s32.totalorder %s27, 0
      %p201 = por %p199, %p200
      %s203 = sadd.s32 %s202, 1
      %p206 = scmp.eq.s32.totalorder %s21, 1
      %p207 = scmp.ne.s32.totalorder %s202, %s204
      %p208 = scmp.eq.s32.totalorder %s21, 0
      %p209 = por %p207, %p208
      %p210 = scmp.ne.s32.totalorder %s202, %s204
      %p211 = scmp.eq.s32.totalorder %s26, 1
      %p212 = por %p210, %p211
      %p213 = scmp.ne.s32.totalorder %s204, %s205
      %p214 = scmp.eq.s32.totalorder %s26, 0
      %p215 = por %p213, %p214
      %p216 = scmp.ne.s32.totalorder %s204, %s205
      %p217 = scmp.eq.s32.totalorder %s27, 1
      %p218 = por %p216, %p217
      %p220 = scmp.ne.s32.totalorder %s205, %s219
      %p221 = scmp.eq.s32.totalorder %s27, 0
      %p222 = por %p220, %p221
      %s224 = sadd.s32 %s223, 1
      %p227 = scmp.eq.s32.totalorder %s21, 1
      %p228 = scmp.ne.s32.totalorder %s223, %s225
      %p229 = scmp.eq.s32.totalorder %s21, 0
      %p230 = por %p228, %p229
      %p231 = scmp.ne.s32.totalorder %s223, %s225
      %p232 = scmp.eq.s32.totalorder %s26, 1
      %p233 = por %p231, %p232
      %p234 = scmp.ne.s32.totalorder %s225, %s226
      %p235 = scmp.eq.s32.totalorder %s26, 0
      %p236 = por %p234, %p235
      %p237 = scmp.ne.s32.totalorder %s225, %s226
      %p238 = scmp.eq.s32.totalorder %s27, 1
      %p239 = por %p237, %p238
      %p241 = scmp.ne.s32.totalorder %s226, %s240
      %p242 = scmp.eq.s32.totalorder %s27, 0
      %p243 = por %p241, %p242
      %s245 = sadd.s32 %s244, 1
      %p248 = scmp.eq.s32.totalorder %s21, 1
      %p249 = scmp.ne.s32.totalorder %s244, %s246
      %p250 = scmp.eq.s32.totalorder %s21, 0
      %p251 = por %p249, %p250
      %p252 = scmp.ne.s32.totalorder %s244, %s246
      %p253 = scmp.eq.s32.totalorder %s26, 1
      %p254 = por %p252, %p253
      %p255 = scmp.ne.s32.totalorder %s246, %s247
      %p256 = scmp.eq.s32.totalorder %s26, 0
      %p257 = por %p255, %p256
      %p258 = scmp.ne.s32.totalorder %s246, %s247
      %p259 = scmp.eq.s32.totalorder %s27, 1
      %p260 = por %p258, %p259
      %p262 = scmp.ne.s32.totalorder %s247, %s261
      %p263 = scmp.eq.s32.totalorder %s27, 0
      %p264 = por %p262, %p263
      %s266 = sadd.s32 %s265, 1
      %p269 = scmp.eq.s32.totalorder %s21, 1
      %p270 = scmp.ne.s32.totalorder %s265, %s267
      %p271 = scmp.eq.s32.totalorder %s21, 0
      %p272 = por %p270, %p271
      %p273 = scmp.ne.s32.totalorder %s265, %s267
      %p274 = scmp.eq.s32.totalorder %s26, 1
      %p275 = por %p273, %p274
      %p276 = scmp.ne.s32.totalorder %s267, %s268
      %p277 = scmp.eq.s32.totalorder %s26, 0
      %p278 = por %p276, %p277
      %p279 = scmp.ne.s32.totalorder %s267, %s268
      %p280 = scmp.eq.s32.totalorder %s27, 1
      %p281 = por %p279, %p280
      %p283 = scmp.ne.s32.totalorder %s268, %s282
      %p284 = scmp.eq.s32.totalorder %s27, 0
      %p285 = por %p283, %p284
      %s286 = ssub.s32 %s21, %s28
      %p287 = scmp.eq.s32.totalorder %s286, 0
      %s289 = sadd.s32 %s288, 1
      %s290 = scalar_select %p287, %s288, %s289
      %p293 = pneg %p287
      %p294 = scmp.eq.s32.totalorder %s21, 1
      %p295 = por %p293, %p294
      %p296 = scmp.ne.s32.totalorder %s288, %s291
      %p297 = scmp.eq.s32.totalorder %s21, 0
      %p298 = por %p296, %p297
      %p299 = scmp.ne.s32.totalorder %s288, %s291
      %p300 = scmp.eq.s32.totalorder %s26, 1
      %p301 = por %p299, %p300
      %p302 = scmp.ne.s32.totalorder %s291, %s292
      %p303 = scmp.eq.s32.totalorder %s26, 0
      %p304 = por %p302, %p303
      %p305 = scmp.ne.s32.totalorder %s291, %s292
      %p306 = scmp.eq.s32.totalorder %s27, 1
      %p307 = por %p305, %p306
      %p309 = scmp.ne.s32.totalorder %s292, %s308
      %p310 = scmp.eq.s32.totalorder %s27, 0
      %p311 = por %p309, %p310
      %p312 = scmp.le.s32.totalorder 1, %s21
      %p313 = scmp.lt.s32.totalorder %s21, 3
      %p314 = pnand %p312, %p313
      %p315 = pneg %p314
      // Predicated region
      $region9: #{learning_to_downsample.1} parent=5 // pred_check
        _
      $region10: #{learning_to_downsample.1} parent=5 // pred_check_branch
        %317 = sbr.rel (%p314) target = $region12
      $region11: #{learning_to_downsample.1} parent=5 // pred_region
        %s318 = ssub.s32 %s21, 1
        // Predicated region
        $region13: #{learning_to_downsample.1} parent=11 // pred_check
          %p319 = pneg %p68
        $region14: #{learning_to_downsample.1} parent=11 // pred_check_branch
          %321 = sbr.rel (%p319) target = $region16
        $region15: #{learning_to_downsample.1} parent=11 // pred_region
          _
        $region16: #{learning_to_downsample.1} parent=11 // pred_fallthru
          _
        // Predicated region
        $region17: #{learning_to_downsample.1} parent=11 // pred_check
          %p322 = pneg %p89
        $region18: #{learning_to_downsample.1} parent=11 // pred_check_branch
          %324 = sbr.rel (%p322) target = $region20
        $region19: #{learning_to_downsample.1} parent=11 // pred_region
          _
        $region20: #{learning_to_downsample.1} parent=11 // pred_fallthru
          _
        // Predicated region
        $region21: #{learning_to_downsample.1} parent=11 // pred_check
          %p325 = pneg %p110
        $region22: #{learning_to_downsample.1} parent=11 // pred_check_branch
          %327 = sbr.rel (%p325) target = $region24
        $region23: #{learning_to_downsample.1} parent=11 // pred_region
          _
        $region24: #{learning_to_downsample.1} parent=11 // pred_fallthru
          _
        // Predicated region
        $region25: #{learning_to_downsample.1} parent=11 // pred_check
          %p328 = pneg %p131
        $region26: #{learning_to_downsample.1} parent=11 // pred_check_branch
          %330 = sbr.rel (%p328) target = $region28
        $region27: #{learning_to_downsample.1} parent=11 // pred_region
          _
        $region28: #{learning_to_downsample.1} parent=11 // pred_fallthru
          _
        // Predicated region
        $region29: #{learning_to_downsample.1} parent=11 // pred_check
          %p331 = pneg %p152
        $region30: #{learning_to_downsample.1} parent=11 // pred_check_branch
          %333 = sbr.rel (%p331) target = $region32
        $region31: #{learning_to_downsample.1} parent=11 // pred_region
          _
        $region32: #{learning_to_downsample.1} parent=11 // pred_fallthru
          _
        // Predicated region
        $region33: #{learning_to_downsample.1} parent=11 // pred_check
          %p334 = pneg %p173
        $region34: #{learning_to_downsample.1} parent=11 // pred_check_branch
          %336 = sbr.rel (%p334) target = $region36
        $region35: #{learning_to_downsample.1} parent=11 // pred_region
          _
        $region36: #{learning_to_downsample.1} parent=11 // pred_fallthru
          _
        // Predicated region
        $region37: #{learning_to_downsample.1} parent=11 // pred_check
          %p337 = pneg %p194
        $region38: #{learning_to_downsample.1} parent=11 // pred_check_branch
          %339 = sbr.rel (%p337) target = $region40
        $region39: #{learning_to_downsample.1} parent=11 // pred_region
          _
        $region40: #{learning_to_downsample.1} parent=11 // pred_fallthru
          _
        // Predicated region
        $region41: #{learning_to_downsample.1} parent=11 // pred_check
          %p340 = pneg %p215
        $region42: #{learning_to_downsample.1} parent=11 // pred_check_branch
          %342 = sbr.rel (%p340) target = $region44
        $region43: #{learning_to_downsample.1} parent=11 // pred_region
          _
        $region44: #{learning_to_downsample.1} parent=11 // pred_fallthru
          _
        // Predicated region
        $region45: #{learning_to_downsample.1} parent=11 // pred_check
          %p343 = pneg %p236
        $region46: #{learning_to_downsample.1} parent=11 // pred_check_branch
          %345 = sbr.rel (%p343) target = $region48
        $region47: #{learning_to_downsample.1} parent=11 // pred_region
          _
        $region48: #{learning_to_downsample.1} parent=11 // pred_fallthru
          _
        // Predicated region
        $region49: #{learning_to_downsample.1} parent=11 // pred_check
          %p346 = pneg %p257
        $region50: #{learning_to_downsample.1} parent=11 // pred_check_branch
          %348 = sbr.rel (%p346) target = $region52
        $region51: #{learning_to_downsample.1} parent=11 // pred_region
          _
        $region52: #{learning_to_downsample.1} parent=11 // pred_fallthru
          _
        // Predicated region
        $region53: #{learning_to_downsample.1} parent=11 // pred_check
          %p349 = pneg %p278
        $region54: #{learning_to_downsample.1} parent=11 // pred_check_branch
          %351 = sbr.rel (%p349) target = $region56
        $region55: #{learning_to_downsample.1} parent=11 // pred_region
          _
        $region56: #{learning_to_downsample.1} parent=11 // pred_fallthru
          _
      $region12: #{learning_to_downsample.1} parent=5 // pred_fallthru
        _
      %p352 = scmp.lt.s32.totalorder %s21, 2
      // Predicated region
      $region57: #{learning_to_downsample.1} parent=5 // pred_check
        %p353 = pneg %p352
      $region58: #{learning_to_downsample.1} parent=5 // pred_check_branch
        %355 = sbr.rel (%p353) target = $region60
      $region59: #{learning_to_downsample.1} parent=5 // pred_region
        // Predicated region
        $region61: #{learning_to_downsample.1} parent=59 // pred_check
          %p356 = pneg %p41
        $region62: #{learning_to_downsample.1} parent=59 // pred_check_branch
          %358 = sbr.rel (%p356) target = $region64
        $region63: #{learning_to_downsample.1} parent=59 // pred_region
          %p359 = scmp.lt.s32.totalorder %s21, 1
          %s360 = scalar_select %p359, %s21, 1
          %s361 = smul.addr %s360, 72
          %s362 = smul.addr %s361, 4
          %s363 = scalar_lea.vmem %s0, %s362
        $region64: #{learning_to_downsample.1} parent=59 // pred_fallthru
          _
      $region60: #{learning_to_downsample.1} parent=5 // pred_fallthru
        _
      %p364 = scmp.le.s32.totalorder 1, %s21
      %p365 = scmp.lt.s32.totalorder %s21, 3
      %p366 = pnand %p364, %p365
      %p367 = pneg %p366
      // Predicated region
      $region65: #{learning_to_downsample.1} parent=5 // pred_check
        _
      $region66: #{learning_to_downsample.1} parent=5 // pred_check_branch
        %369 = sbr.rel (%p366) target = $region68
      $region67: #{learning_to_downsample.1} parent=5 // pred_region
        %s370 = ssub.s32 %s21, 1
        %p371 = scmp.lt.s32.totalorder %s26, 1
        %s372 = scalar_select %p371, %s26, 1
        %s373 = smul.addr %s372, 72
        %s374 = smul.addr %s373, 4
        %s375 = scalar_lea.vmem %s0, %s374
        %p376 = pneg %p47
        %p377 = pneg %p44
        %p378 = pneg %p68
        %p379 = pneg %p65
        %p380 = pneg %p89
        %p381 = pneg %p86
        %p382 = pneg %p110
        %p383 = pneg %p107
        %p384 = pneg %p131
        %p385 = pneg %p128
        %p386 = pneg %p152
        %p387 = pneg %p149
        %p388 = pneg %p173
        %p389 = pneg %p170
        %p390 = pneg %p194
        %p391 = pneg %p191
        %p392 = pneg %p215
        %p393 = pneg %p212
        %p394 = pneg %p236
        %p395 = pneg %p233
        %p396 = pneg %p257
        %p397 = pneg %p254
        %p398 = pneg %p278
        %p399 = pneg %p275
        %p400 = pneg %p304
        %p401 = pneg %p301
        %s402 = sand.u32 %s291, 1
        %s403 = scalar_lea.sflag [#allocation3], %s402
        %s404 = sand.u32 %s291, 1
        %s405 = smul.addr %s404, 4
        %s406 = scalar_lea.vmem [#allocation2], %s405
        %p407 = scmp.lt.s32.totalorder %s26, 1
        %s408 = scalar_select %p407, %s26, 1
        %s409 = smul.addr %s408, 72
        %s410 = smul.addr %s409, 4
        %s411 = scalar_lea.vmem %s0, %s410
        %v413 = vld [vmem:[%s411] sm:$0xf]
        %v414 = vld [vmem:[%s411 + $0x4] sm:$0xf]
        %v415 = vld [vmem:[%s411 + $0x8] sm:$0xf]
        %v416 = vld [vmem:[%s411 + $0xc] sm:$0xf]
        %v417 = vld [vmem:[%s411 + $0x10] sm:$0xf]
        %v418 = vld [vmem:[%s411 + $0x14] sm:$0xf]
        %v419 = vld [vmem:[%s411 + $0x18] sm:$0xf]
        %v420 = vld [vmem:[%s411 + $0x1c] sm:$0xf]
        %v421 = vld [vmem:[%s411 + $0x20] sm:$0xf]
        %v422 = vld [vmem:[%s411 + $0x24] sm:$0xf]
        %v423 = vld [vmem:[%s411 + $0x28] sm:$0xf]
        %v424 = vld [vmem:[%s411 + $0x2c] sm:$0xf]
        %v425 = vld [vmem:[%s411 + $0x30] sm:$0xf]
        %v426 = vld [vmem:[%s411 + $0x34] sm:$0xf]
        %v427 = vld [vmem:[%s411 + $0x38] sm:$0xf]
        %v428 = vld [vmem:[%s411 + $0x3c] sm:$0xf]
        %v429 = vld [vmem:[%s411 + $0x40] sm:$0xf]
        %v430 = vld [vmem:[%s411 + $0x44] sm:$0xf]
        %v431 = vld [vmem:[%s411 + $0x48] sm:$0xf]
        %v432 = vld [vmem:[%s411 + $0x4c] sm:$0xf]
        %v433 = vld [vmem:[%s411 + $0x50] sm:$0xf]
        %v434 = vld [vmem:[%s411 + $0x54] sm:$0xf]
        %v435 = vld [vmem:[%s411 + $0x58] sm:$0xf]
        %v436 = vld [vmem:[%s411 + $0x5c] sm:$0xf]
        %v437 = vld [vmem:[%s411 + $0x60] sm:$0xf]
        %v438 = vld [vmem:[%s411 + $0x64] sm:$0xf]
        %v439 = vld [vmem:[%s411 + $0x68] sm:$0xf]
        %v440 = vld [vmem:[%s411 + $0x6c] sm:$0xf]
        %v441 = vld [vmem:[%s411 + $0x70] sm:$0xf]
        %v442 = vld [vmem:[%s411 + $0x74] sm:$0xf]
        %v443 = vld [vmem:[%s411 + $0x78] sm:$0xf]
        %v444 = vld [vmem:[%s411 + $0x7c] sm:$0xf]
        %v445 = vld [vmem:[%s411 + $0x80] sm:$0xf]
        %v446 = vld [vmem:[%s411 + $0x84] sm:$0xf]
        %v447 = vld [vmem:[%s411 + $0x88] sm:$0xf]
        %v448 = vld [vmem:[%s411 + $0x8c] sm:$0xf]
        %v449 = vld [vmem:[%s411 + $0x90] sm:$0xf]
        %v450 = vld [vmem:[%s411 + $0x94] sm:$0xf]
        %v451 = vld [vmem:[%s411 + $0x98] sm:$0xf]
        %v452 = vld [vmem:[%s411 + $0x9c] sm:$0xf]
        %v453 = vld [vmem:[%s411 + $0xa0] sm:$0xf]
        %v454 = vld [vmem:[%s411 + $0xa4] sm:$0xf]
        %v455 = vld [vmem:[%s411 + $0xa8] sm:$0xf]
        %v456 = vld [vmem:[%s411 + $0xac] sm:$0xf]
        %v457 = vld [vmem:[%s411 + $0xb0] sm:$0xf]
        %v458 = vld [vmem:[%s411 + $0xb4] sm:$0xf]
        %v459 = vld [vmem:[%s411 + $0xb8] sm:$0xf]
        %v460 = vld [vmem:[%s411 + $0xbc] sm:$0xf]
        %v461 = vld [vmem:[%s411 + $0xc0] sm:$0xf]
        %v462 = vld [vmem:[%s411 + $0xc4] sm:$0xf]
        %v463 = vld [vmem:[%s411 + $0xc8] sm:$0xf]
        %v464 = vld [vmem:[%s411 + $0xcc] sm:$0xf]
        %v465 = vld [vmem:[%s411 + $0xd0] sm:$0xf]
        %v466 = vld [vmem:[%s411 + $0xd4] sm:$0xf]
        %v467 = vld [vmem:[%s411 + $0xd8] sm:$0xf]
        %v468 = vld [vmem:[%s411 + $0xdc] sm:$0xf]
        %v469 = vld [vmem:[%s411 + $0xe0] sm:$0xf]
        %v470 = vld [vmem:[%s411 + $0xe4] sm:$0xf]
        %v471 = vld [vmem:[%s411 + $0xe8] sm:$0xf]
        %v472 = vld [vmem:[%s411 + $0xec] sm:$0xf]
        %v473 = vld [vmem:[%s411 + $0xf0] sm:$0xf]
        %v474 = vld [vmem:[%s411 + $0xf4] sm:$0xf]
        %v475 = vld [vmem:[%s411 + $0xf8] sm:$0xf]
        %v476 = vld [vmem:[%s411 + $0xfc] sm:$0xf]
        %v477 = vld [vmem:[%s411 + $0x100] sm:$0xf]
        %v478 = vld [vmem:[%s411 + $0x104] sm:$0xf]
        %v479 = vld [vmem:[%s411 + $0x108] sm:$0xf]
        %v480 = vld [vmem:[%s411 + $0x10c] sm:$0xf]
        %v481 = vld [vmem:[%s411 + $0x110] sm:$0xf]
        %v482 = vld [vmem:[%s411 + $0x114] sm:$0xf]
        %v483 = vld [vmem:[%s411 + $0x118] sm:$0xf]
        %v484 = vld [vmem:[%s411 + $0x11c] sm:$0xf]
        %v485 = vld [vmem:[%s2] sm:$0xf]
        %v486 = vld [vmem:[%s2 + $0x4] sm:$0xf]
        %v487 = vld [vmem:[%s2 + $0x8] sm:$0xf]
        %v488 = vld [vmem:[%s2 + $0xc] sm:$0xf]
        %v489 = vld [vmem:[%s3] sm:$0x1]
        %v491 = vperm.slane %v489, 0
        %v565 = vunpack.c.l.b16 %v413
        %v566 = vunpack.c.l.b16 %v414
        %v567 = vunpack.c.l.b16 %v415
        %v568 = vunpack.c.l.b16 %v416
        %v569 = vunpack.c.l.b16 %v417
        %v570 = vunpack.c.l.b16 %v418
        %v571 = vunpack.c.l.b16 %v419
        %v572 = vunpack.c.l.b16 %v420
        %v573 = vunpack.c.l.b16 %v421
        %v574 = vunpack.c.l.b16 %v422
        %v575 = vunpack.c.l.b16 %v423
        %v576 = vunpack.c.l.b16 %v424
        %v577 = vunpack.c.l.b16 %v425
        %v578 = vunpack.c.l.b16 %v426
        %v579 = vunpack.c.l.b16 %v427
        %v580 = vunpack.c.l.b16 %v428
        %v581 = vunpack.c.l.b16 %v429
        %v582 = vunpack.c.l.b16 %v430
        %v583 = vunpack.c.l.b16 %v431
        %v584 = vunpack.c.l.b16 %v432
        %v585 = vunpack.c.l.b16 %v433
        %v586 = vunpack.c.l.b16 %v434
        %v587 = vunpack.c.l.b16 %v435
        %v588 = vunpack.c.l.b16 %v436
        %v589 = vunpack.c.l.b16 %v437
        %v590 = vunpack.c.l.b16 %v438
        %v591 = vunpack.c.l.b16 %v439
        %v592 = vunpack.c.l.b16 %v440
        %v593 = vunpack.c.l.b16 %v441
        %v594 = vunpack.c.l.b16 %v442
        %v595 = vunpack.c.l.b16 %v443
        %v596 = vunpack.c.l.b16 %v444
        %v597 = vunpack.c.l.b16 %v445
        %v598 = vunpack.c.l.b16 %v446
        %v599 = vunpack.c.l.b16 %v447
        %v600 = vunpack.c.l.b16 %v448
        %v601 = vunpack.c.l.b16 %v449
        %v602 = vunpack.c.l.b16 %v450
        %v603 = vunpack.c.l.b16 %v451
        %v604 = vunpack.c.l.b16 %v452
        %v605 = vunpack.c.l.b16 %v453
        %v606 = vunpack.c.l.b16 %v454
        %v607 = vunpack.c.l.b16 %v455
        %v608 = vunpack.c.l.b16 %v456
        %v609 = vunpack.c.l.b16 %v457
        %v610 = vunpack.c.l.b16 %v458
        %v611 = vunpack.c.l.b16 %v459
        %v612 = vunpack.c.l.b16 %v460
        %v613 = vunpack.c.l.b16 %v461
        %v614 = vunpack.c.l.b16 %v462
        %v615 = vunpack.c.l.b16 %v463
        %v616 = vunpack.c.l.b16 %v464
        %v617 = vunpack.c.l.b16 %v465
        %v618 = vunpack.c.l.b16 %v466
        %v619 = vunpack.c.l.b16 %v467
        %v620 = vunpack.c.l.b16 %v468
        %v621 = vunpack.c.l.b16 %v469
        %v622 = vunpack.c.l.b16 %v470
        %v623 = vunpack.c.l.b16 %v471
        %v624 = vunpack.c.l.b16 %v472
        %v625 = vunpack.c.l.b16 %v473
        %v626 = vunpack.c.l.b16 %v474
        %v627 = vunpack.c.l.b16 %v475
        %v628 = vunpack.c.l.b16 %v476
        %v629 = vunpack.c.l.b16 %v477
        %v630 = vunpack.c.l.b16 %v478
        %v631 = vunpack.c.l.b16 %v479
        %v632 = vunpack.c.l.b16 %v480
        %v633 = vunpack.c.l.b16 %v481
        %v634 = vunpack.c.l.b16 %v482
        %v635 = vunpack.c.l.b16 %v483
        %v636 = vunpack.c.l.b16 %v484
        %v637 = vpack.c.b16 %v566, %v565
        %v638 = vpack.c.b16 %v568, %v567
        %v639 = vpack.c.b16 %v570, %v569
        %v640 = vpack.c.b16 %v572, %v571
        %v641 = vpack.c.b16 %v574, %v573
        %v642 = vpack.c.b16 %v576, %v575
        %v643 = vpack.c.b16 %v578, %v577
        %v644 = vpack.c.b16 %v580, %v579
        %v645 = vpack.c.b16 %v582, %v581
        %v646 = vpack.c.b16 %v584, %v583
        %v647 = vpack.c.b16 %v586, %v585
        %v648 = vpack.c.b16 %v588, %v587
        %v649 = vpack.c.b16 %v590, %v589
        %v650 = vpack.c.b16 %v592, %v591
        %v651 = vpack.c.b16 %v594, %v593
        %v652 = vpack.c.b16 %v596, %v595
        %v653 = vpack.c.b16 %v598, %v597
        %v654 = vpack.c.b16 %v600, %v599
        %v655 = vpack.c.b16 %v602, %v601
        %v656 = vpack.c.b16 %v604, %v603
        %v657 = vpack.c.b16 %v606, %v605
        %v658 = vpack.c.b16 %v608, %v607
        %v659 = vpack.c.b16 %v610, %v609
        %v660 = vpack.c.b16 %v612, %v611
        %v661 = vpack.c.b16 %v614, %v613
        %v662 = vpack.c.b16 %v616, %v615
        %v663 = vpack.c.b16 %v618, %v617
        %v664 = vpack.c.b16 %v620, %v619
        %v665 = vpack.c.b16 %v622, %v621
        %v666 = vpack.c.b16 %v624, %v623
        %v667 = vpack.c.b16 %v626, %v625
        %v668 = vpack.c.b16 %v628, %v627
        %v669 = vpack.c.b16 %v630, %v629
        %v670 = vpack.c.b16 %v632, %v631
        %v671 = vpack.c.b16 %v634, %v633
        %v672 = vpack.c.b16 %v636, %v635
        %v677 = vunpack.c.l.b16 %v485
        %v678 = vunpack.c.l.b16 %v486
        %v679 = vunpack.c.l.b16 %v487
        %v680 = vunpack.c.l.b16 %v488
        %v681 = vpack.c.b16 %v678, %v677
        %v682 = vpack.c.b16 %v680, %v679
        %vm685 = vcmask 261120
        %v687 = vsel %vm685, %v637, 0
        %v690 = vsel %vm685, %v638, 0
        %v693 = vsel %vm685, %v639, 0
        %v696 = vsel %vm685, %v640, 0
        %v699 = vsel %vm685, %v641, 0
        %v702 = vsel %vm685, %v642, 0
        %v705 = vsel %vm685, %v643, 0
        %v708 = vsel %vm685, %v644, 0
        %v711 = vsel %vm685, %v645, 0
        %v714 = vsel %vm685, %v646, 0
        %v717 = vsel %vm685, %v647, 0
        %v720 = vsel %vm685, %v648, 0
        %v723 = vsel %vm685, %v649, 0
        %v726 = vsel %vm685, %v650, 0
        %v729 = vsel %vm685, %v651, 0
        %v732 = vsel %vm685, %v652, 0
        %v735 = vsel %vm685, %v653, 0
        %v738 = vsel %vm685, %v654, 0
        %v741 = vsel %vm685, %v655, 0
        %v744 = vsel %vm685, %v656, 0
        %v747 = vsel %vm685, %v657, 0
        %v750 = vsel %vm685, %v658, 0
        %v753 = vsel %vm685, %v659, 0
        %v756 = vsel %vm685, %v660, 0
        %v759 = vsel %vm685, %v661, 0
        %v762 = vsel %vm685, %v662, 0
        %v765 = vsel %vm685, %v663, 0
        %v768 = vsel %vm685, %v664, 0
        %v771 = vsel %vm685, %v665, 0
        %v774 = vsel %vm685, %v666, 0
        %v777 = vsel %vm685, %v667, 0
        %v780 = vsel %vm685, %v668, 0
        %v783 = vsel %vm685, %v669, 0
        %v786 = vsel %vm685, %v670, 0
        %v789 = vsel %vm685, %v671, 0
        %v792 = vsel %vm685, %v672, 0
        %794 = vmatpush.bf16.msra.mxu0 0
        %795 = vmatpush.bf16.msra.mxu0 0
        %796 = vmatpush.bf16.msra.mxu0 0
        %797 = vmatpush.bf16.msra.mxu0 0
        %798 = vmatpush.bf16.msra.mxu0 0
        %799 = vmatpush.bf16.msra.mxu0 0
        %800 = vmatpush.bf16.msra.mxu0 %v682
        %801 = vmatpush.bf16.msra.mxu0 %v681
        %802 = vmatmul.bf16.gmra.mxu0 %v687
        %v803 = vpop.f32.mrf.mxu0
        %v804 = vadd.f32 %v491, %v803
        %v805 = vpop.f32.mrf.mxu0
        %v806 = vadd.f32 %v491, %v805
        %807 = vmatmul.bf16.gmra.mxu0 %v690
        %v808 = vpop.f32.mrf.mxu0
        %v809 = vadd.f32 %v491, %v808
        %v810 = vpop.f32.mrf.mxu0
        %v811 = vadd.f32 %v491, %v810
        %812 = vmatmul.bf16.gmra.mxu0 %v693
        %v813 = vpop.f32.mrf.mxu0
        %v814 = vadd.f32 %v491, %v813
        %v815 = vpop.f32.mrf.mxu0
        %v816 = vadd.f32 %v491, %v815
        %817 = vmatmul.bf16.gmra.mxu0 %v696
        %v818 = vpop.f32.mrf.mxu0
        %v819 = vadd.f32 %v491, %v818
        %v820 = vpop.f32.mrf.mxu0
        %v821 = vadd.f32 %v491, %v820
        %822 = vmatmul.bf16.gmra.mxu0 %v699
        %v823 = vpop.f32.mrf.mxu0
        %v824 = vadd.f32 %v491, %v823
        %v825 = vpop.f32.mrf.mxu0
        %v826 = vadd.f32 %v491, %v825
        %827 = vmatmul.bf16.gmra.mxu0 %v702
        %v828 = vpop.f32.mrf.mxu0
        %v829 = vadd.f32 %v491, %v828
        %v830 = vpop.f32.mrf.mxu0
        %v831 = vadd.f32 %v491, %v830
        %832 = vmatmul.bf16.gmra.mxu0 %v705
        %v833 = vpop.f32.mrf.mxu0
        %v834 = vadd.f32 %v491, %v833
        %v835 = vpop.f32.mrf.mxu0
        %v836 = vadd.f32 %v491, %v835
        %837 = vmatmul.bf16.gmra.mxu0 %v708
        %v838 = vpop.f32.mrf.mxu0
        %v839 = vadd.f32 %v491, %v838
        %v840 = vpop.f32.mrf.mxu0
        %v841 = vadd.f32 %v491, %v840
        %842 = vmatmul.bf16.gmra.mxu0 %v711
        %v843 = vpop.f32.mrf.mxu0
        %v844 = vadd.f32 %v491, %v843
        %v845 = vpop.f32.mrf.mxu0
        %v846 = vadd.f32 %v491, %v845
        %847 = vmatmul.bf16.gmra.mxu0 %v714
        %v848 = vpop.f32.mrf.mxu0
        %v849 = vadd.f32 %v491, %v848
        %v850 = vpop.f32.mrf.mxu0
        %v851 = vadd.f32 %v491, %v850
        %852 = vmatmul.bf16.gmra.mxu0 %v717
        %v853 = vpop.f32.mrf.mxu0
        %v854 = vadd.f32 %v491, %v853
        %v855 = vpop.f32.mrf.mxu0
        %v856 = vadd.f32 %v491, %v855
        %857 = vmatmul.bf16.gmra.mxu0 %v720
        %v858 = vpop.f32.mrf.mxu0
        %v859 = vadd.f32 %v491, %v858
        %v860 = vpop.f32.mrf.mxu0
        %v861 = vadd.f32 %v491, %v860
        %862 = vmatmul.bf16.gmra.mxu0 %v723
        %v863 = vpop.f32.mrf.mxu0
        %v864 = vadd.f32 %v491, %v863
        %v865 = vpop.f32.mrf.mxu0
        %v866 = vadd.f32 %v491, %v865
        %867 = vmatmul.bf16.gmra.mxu0 %v726
        %v868 = vpop.f32.mrf.mxu0
        %v869 = vadd.f32 %v491, %v868
        %v870 = vpop.f32.mrf.mxu0
        %v871 = vadd.f32 %v491, %v870
        %872 = vmatmul.bf16.gmra.mxu0 %v729
        %v873 = vpop.f32.mrf.mxu0
        %v874 = vadd.f32 %v491, %v873
        %v875 = vpop.f32.mrf.mxu0
        %v876 = vadd.f32 %v491, %v875
        %877 = vmatmul.bf16.gmra.mxu0 %v732
        %v878 = vpop.f32.mrf.mxu0
        %v879 = vadd.f32 %v491, %v878
        %v880 = vpop.f32.mrf.mxu0
        %v881 = vadd.f32 %v491, %v880
        %882 = vmatmul.bf16.gmra.mxu0 %v735
        %v883 = vpop.f32.mrf.mxu0
        %v884 = vadd.f32 %v491, %v883
        %v885 = vpop.f32.mrf.mxu0
        %v886 = vadd.f32 %v491, %v885
        %887 = vmatmul.bf16.gmra.mxu0 %v738
        %v888 = vpop.f32.mrf.mxu0
        %v889 = vadd.f32 %v491, %v888
        %v890 = vpop.f32.mrf.mxu0
        %v891 = vadd.f32 %v491, %v890
        %892 = vmatmul.bf16.gmra.mxu0 %v741
        %v893 = vpop.f32.mrf.mxu0
        %v894 = vadd.f32 %v491, %v893
        %v895 = vpop.f32.mrf.mxu0
        %v896 = vadd.f32 %v491, %v895
        %897 = vmatmul.bf16.gmra.mxu0 %v744
        %v898 = vpop.f32.mrf.mxu0
        %v899 = vadd.f32 %v491, %v898
        %v900 = vpop.f32.mrf.mxu0
        %v901 = vadd.f32 %v491, %v900
        %902 = vmatmul.bf16.gmra.mxu0 %v747
        %v903 = vpop.f32.mrf.mxu0
        %v904 = vadd.f32 %v491, %v903
        %v905 = vpop.f32.mrf.mxu0
        %v906 = vadd.f32 %v491, %v905
        %907 = vmatmul.bf16.gmra.mxu0 %v750
        %v908 = vpop.f32.mrf.mxu0
        %v909 = vadd.f32 %v491, %v908
        %v910 = vpop.f32.mrf.mxu0
        %v911 = vadd.f32 %v491, %v910
        %912 = vmatmul.bf16.gmra.mxu0 %v753
        %v913 = vpop.f32.mrf.mxu0
        %v914 = vadd.f32 %v491, %v913
        %v915 = vpop.f32.mrf.mxu0
        %v916 = vadd.f32 %v491, %v915
        %917 = vmatmul.bf16.gmra.mxu0 %v756
        %v918 = vpop.f32.mrf.mxu0
        %v919 = vadd.f32 %v491, %v918
        %v920 = vpop.f32.mrf.mxu0
        %v921 = vadd.f32 %v491, %v920
        %922 = vmatmul.bf16.gmra.mxu0 %v759
        %v923 = vpop.f32.mrf.mxu0
        %v924 = vadd.f32 %v491, %v923
        %v925 = vpop.f32.mrf.mxu0
        %v926 = vadd.f32 %v491, %v925
        %927 = vmatmul.bf16.gmra.mxu0 %v762
        %v928 = vpop.f32.mrf.mxu0
        %v929 = vadd.f32 %v491, %v928
        %v930 = vpop.f32.mrf.mxu0
        %v931 = vadd.f32 %v491, %v930
        %932 = vmatmul.bf16.gmra.mxu0 %v765
        %v933 = vpop.f32.mrf.mxu0
        %v934 = vadd.f32 %v491, %v933
        %v935 = vpop.f32.mrf.mxu0
        %v936 = vadd.f32 %v491, %v935
        %937 = vmatmul.bf16.gmra.mxu0 %v768
        %v938 = vpop.f32.mrf.mxu0
        %v939 = vadd.f32 %v491, %v938
        %v940 = vpop.f32.mrf.mxu0
        %v941 = vadd.f32 %v491, %v940
        %942 = vmatmul.bf16.gmra.mxu0 %v771
        %v943 = vpop.f32.mrf.mxu0
        %v944 = vadd.f32 %v491, %v943
        %v945 = vpop.f32.mrf.mxu0
        %v946 = vadd.f32 %v491, %v945
        %947 = vmatmul.bf16.gmra.mxu0 %v774
        %v948 = vpop.f32.mrf.mxu0
        %v949 = vadd.f32 %v491, %v948
        %v950 = vpop.f32.mrf.mxu0
        %v951 = vadd.f32 %v491, %v950
        %952 = vmatmul.bf16.gmra.mxu0 %v777
        %v953 = vpop.f32.mrf.mxu0
        %v954 = vadd.f32 %v491, %v953
        %v955 = vpop.f32.mrf.mxu0
        %v956 = vadd.f32 %v491, %v955
        %957 = vmatmul.bf16.gmra.mxu0 %v780
        %v958 = vpop.f32.mrf.mxu0
        %v959 = vadd.f32 %v491, %v958
        %v960 = vpop.f32.mrf.mxu0
        %v961 = vadd.f32 %v491, %v960
        %962 = vmatmul.bf16.gmra.mxu0 %v783
        %v963 = vpop.f32.mrf.mxu0
        %v964 = vadd.f32 %v491, %v963
        %v965 = vpop.f32.mrf.mxu0
        %v966 = vadd.f32 %v491, %v965
        %967 = vmatmul.bf16.gmra.mxu0 %v786
        %v968 = vpop.f32.mrf.mxu0
        %v969 = vadd.f32 %v491, %v968
        %v970 = vpop.f32.mrf.mxu0
        %v971 = vadd.f32 %v491, %v970
        %972 = vmatmul.bf16.gmra.mxu0 %v789
        %v973 = vpop.f32.mrf.mxu0
        %v974 = vadd.f32 %v491, %v973
        %v975 = vpop.f32.mrf.mxu0
        %v976 = vadd.f32 %v491, %v975
        %977 = vmatmul.bf16.gmra.mxu0 %v792
        %v978 = vpop.f32.mrf.mxu0
        %v979 = vadd.f32 %v491, %v978
        %v980 = vpop.f32.mrf.mxu0
        %v981 = vadd.f32 %v491, %v980
        %982 = vdwg.mxu0
        %v983 = vmax.f32 %v804, 0.0
        %v984 = vmax.f32 %v806, 0.0
        %v985 = vmax.f32 %v809, 0.0
        %v986 = vmax.f32 %v811, 0.0
        %v987 = vmax.f32 %v814, 0.0
        %v988 = vmax.f32 %v816, 0.0
        %v989 = vmax.f32 %v819, 0.0
        %v990 = vmax.f32 %v821, 0.0
        %v991 = vmax.f32 %v824, 0.0
        %v992 = vmax.f32 %v826, 0.0
        %v993 = vmax.f32 %v829, 0.0
        %v994 = vmax.f32 %v831, 0.0
        %v995 = vmax.f32 %v834, 0.0
        %v996 = vmax.f32 %v836, 0.0
        %v997 = vmax.f32 %v839, 0.0
        %v998 = vmax.f32 %v841, 0.0
        %v999 = vmax.f32 %v844, 0.0
        %v1000 = vmax.f32 %v846, 0.0
        %v1001 = vmax.f32 %v849, 0.0
        %v1002 = vmax.f32 %v851, 0.0
        %v1003 = vmax.f32 %v854, 0.0
        %v1004 = vmax.f32 %v856, 0.0
        %v1005 = vmax.f32 %v859, 0.0
        %v1006 = vmax.f32 %v861, 0.0
        %v1007 = vmax.f32 %v864, 0.0
        %v1008 = vmax.f32 %v866, 0.0
        %v1009 = vmax.f32 %v869, 0.0
        %v1010 = vmax.f32 %v871, 0.0
        %v1011 = vmax.f32 %v874, 0.0
        %v1012 = vmax.f32 %v876, 0.0
        %v1013 = vmax.f32 %v879, 0.0
        %v1014 = vmax.f32 %v881, 0.0
        %v1015 = vmax.f32 %v884, 0.0
        %v1016 = vmax.f32 %v886, 0.0
        %v1017 = vmax.f32 %v889, 0.0
        %v1018 = vmax.f32 %v891, 0.0
        %v1019 = vmax.f32 %v894, 0.0
        %v1020 = vmax.f32 %v896, 0.0
        %v1021 = vmax.f32 %v899, 0.0
        %v1022 = vmax.f32 %v901, 0.0
        %v1023 = vmax.f32 %v904, 0.0
        %v1024 = vmax.f32 %v906, 0.0
        %v1025 = vmax.f32 %v909, 0.0
        %v1026 = vmax.f32 %v911, 0.0
        %v1027 = vmax.f32 %v914, 0.0
        %v1028 = vmax.f32 %v916, 0.0
        %v1029 = vmax.f32 %v919, 0.0
        %v1030 = vmax.f32 %v921, 0.0
        %v1031 = vmax.f32 %v924, 0.0
        %v1032 = vmax.f32 %v926, 0.0
        %v1033 = vmax.f32 %v929, 0.0
        %v1034 = vmax.f32 %v931, 0.0
        %v1035 = vmax.f32 %v934, 0.0
        %v1036 = vmax.f32 %v936, 0.0
        %v1037 = vmax.f32 %v939, 0.0
        %v1038 = vmax.f32 %v941, 0.0
        %v1039 = vmax.f32 %v944, 0.0
        %v1040 = vmax.f32 %v946, 0.0
        %v1041 = vmax.f32 %v949, 0.0
        %v1042 = vmax.f32 %v951, 0.0
        %v1043 = vmax.f32 %v954, 0.0
        %v1044 = vmax.f32 %v956, 0.0
        %v1045 = vmax.f32 %v959, 0.0
        %v1046 = vmax.f32 %v961, 0.0
        %v1047 = vmax.f32 %v964, 0.0
        %v1048 = vmax.f32 %v966, 0.0
        %v1049 = vmax.f32 %v969, 0.0
        %v1050 = vmax.f32 %v971, 0.0
        %v1051 = vmax.f32 %v974, 0.0
        %v1052 = vmax.f32 %v976, 0.0
        %v1053 = vmax.f32 %v979, 0.0
        %v1054 = vmax.f32 %v981, 0.0
        %v1055 = vld [vmem:[%s1] sm:$0xff]
        %v1056 = vld [vmem:[%s1 + $0x8] sm:$0xff]
        %v1057 = vld [vmem:[%s1 + $0x10] sm:$0xff]
        %v1058 = vld [vmem:[%s1 + $0x18] sm:$0xff]
        %v1059 = vld [vmem:[%s1 + $0x20] sm:$0xff]
        %v1060 = vld [vmem:[%s1 + $0x28] sm:$0xff]
        %v1061 = vld [vmem:[%s1 + $0x30] sm:$0xff]
        %v1062 = vld [vmem:[%s1 + $0x38] sm:$0xff]
        %v1063 = vld [vmem:[%s1 + $0x40] sm:$0xff]
        %v1064 = vld [vmem:[%s1 + $0x48] sm:$0xff]
        %v1065 = vld [vmem:[%s1 + $0x50] sm:$0xff]
        %v1066 = vld [vmem:[%s1 + $0x58] sm:$0xff]
        %v1067 = vld [vmem:[%s1 + $0x60] sm:$0xff]
        %v1068 = vld [vmem:[%s1 + $0x68] sm:$0xff]
        %v1069 = vld [vmem:[%s1 + $0x70] sm:$0xff]
        %v1070 = vld [vmem:[%s1 + $0x78] sm:$0xff]
        %v1071 = vld [vmem:[%s1 + $0x80] sm:$0xff]
        %v1072 = vld [vmem:[%s1 + $0x88] sm:$0xff]
        %v1073 = vld [vmem:[%s1 + $0x90] sm:$0xff]
        %v1074 = vld [vmem:[%s1 + $0x98] sm:$0xff]
        %v1075 = vld [vmem:[%s1 + $0xa0] sm:$0xff]
        %v1076 = vld [vmem:[%s1 + $0xa8] sm:$0xff]
        %v1077 = vld [vmem:[%s1 + $0xb0] sm:$0xff]
        %v1078 = vld [vmem:[%s1 + $0xb8] sm:$0xff]
        %v1079 = vld [vmem:[%s1 + $0xc0] sm:$0xff]
        %v1080 = vld [vmem:[%s1 + $0xc8] sm:$0xff]
        %v1081 = vld [vmem:[%s1 + $0xd0] sm:$0xff]
        %v1082 = vld [vmem:[%s1 + $0xd8] sm:$0xff]
        %v1083 = vld [vmem:[%s1 + $0xe0] sm:$0xff]
        %v1084 = vld [vmem:[%s1 + $0xe8] sm:$0xff]
        %v1085 = vld [vmem:[%s1 + $0xf0] sm:$0xff]
        %v1086 = vld [vmem:[%s1 + $0xf8] sm:$0xff]
        %v1087 = vld [vmem:[%s1 + $0x100] sm:$0xff]
        %v1088 = vld [vmem:[%s1 + $0x108] sm:$0xff]
        %v1089 = vld [vmem:[%s1 + $0x110] sm:$0xff]
        %v1090 = vld [vmem:[%s1 + $0x118] sm:$0xff]
        %v1091 = vld [vmem:[%s1 + $0x120] sm:$0xff]
        %v1092 = vld [vmem:[%s1 + $0x128] sm:$0xff]
        %v1093 = vld [vmem:[%s1 + $0x130] sm:$0xff]
        %v1094 = vld [vmem:[%s1 + $0x138] sm:$0xff]
        %v1095 = vld [vmem:[%s1 + $0x140] sm:$0xff]
        %v1096 = vld [vmem:[%s1 + $0x148] sm:$0xff]
        %v1097 = vld [vmem:[%s1 + $0x150] sm:$0xff]
        %v1098 = vld [vmem:[%s1 + $0x158] sm:$0xff]
        %v1099 = vld [vmem:[%s1 + $0x160] sm:$0xff]
        %v1100 = vld [vmem:[%s1 + $0x168] sm:$0xff]
        %v1101 = vld [vmem:[%s1 + $0x170] sm:$0xff]
        %v1102 = vld [vmem:[%s1 + $0x178] sm:$0xff]
        %v1103 = vld [vmem:[%s1 + $0x180] sm:$0xff]
        %v1104 = vld [vmem:[%s1 + $0x188] sm:$0xff]
        %v1105 = vld [vmem:[%s1 + $0x190] sm:$0xff]
        %v1106 = vld [vmem:[%s1 + $0x198] sm:$0xff]
        %v1107 = vld [vmem:[%s1 + $0x1a0] sm:$0xff]
        %v1108 = vld [vmem:[%s1 + $0x1a8] sm:$0xff]
        %v1109 = vld [vmem:[%s1 + $0x1b0] sm:$0xff]
        %v1110 = vld [vmem:[%s1 + $0x1b8] sm:$0xff]
        %v1111 = vld [vmem:[%s1 + $0x1c0] sm:$0xff]
        %v1112 = vld [vmem:[%s1 + $0x1c8] sm:$0xff]
        %v1113 = vld [vmem:[%s1 + $0x1d0] sm:$0xff]
        %v1114 = vld [vmem:[%s1 + $0x1d8] sm:$0xff]
        %v1115 = vld [vmem:[%s1 + $0x1e0] sm:$0xff]
        %v1116 = vld [vmem:[%s1 + $0x1e8] sm:$0xff]
        %v1117 = vld [vmem:[%s1 + $0x1f0] sm:$0xff]
        %v1118 = vld [vmem:[%s1 + $0x1f8] sm:$0xff]
        %v1119 = vld [vmem:[%s1 + $0x200] sm:$0xff]
        %v1120 = vld [vmem:[%s1 + $0x208] sm:$0xff]
        %v1121 = vld [vmem:[%s1 + $0x210] sm:$0xff]
        %v1122 = vld [vmem:[%s1 + $0x218] sm:$0xff]
        %v1123 = vld [vmem:[%s1 + $0x220] sm:$0xff]
        %v1124 = vld [vmem:[%s1 + $0x228] sm:$0xff]
        %v1125 = vld [vmem:[%s1 + $0x230] sm:$0xff]
        %v1126 = vld [vmem:[%s1 + $0x238] sm:$0xff]
        %1128 = vset.pattern.permute.xlu0 0
        %1129 = vperm.xlu0 %1128, %v1055
        %v1130 = vpop.permute.xlu0 %1129
        %1133 = vset.pattern.permute.xlu0 0
        %1134 = vperm.xlu0 %1133, %v1056
        %v1135 = vpop.permute.xlu0 %1134
        %1138 = vset.pattern.permute.xlu0 0
        %1139 = vperm.xlu0 %1138, %v1057
        %v1140 = vpop.permute.xlu0 %1139
        %1143 = vset.pattern.permute.xlu0 0
        %1144 = vperm.xlu0 %1143, %v1058
        %v1145 = vpop.permute.xlu0 %1144
        %1148 = vset.pattern.permute.xlu0 0
        %1149 = vperm.xlu0 %1148, %v1059
        %v1150 = vpop.permute.xlu0 %1149
        %1153 = vset.pattern.permute.xlu0 0
        %1154 = vperm.xlu0 %1153, %v1060
        %v1155 = vpop.permute.xlu0 %1154
        %1158 = vset.pattern.permute.xlu0 0
        %1159 = vperm.xlu0 %1158, %v1061
        %v1160 = vpop.permute.xlu0 %1159
        %1163 = vset.pattern.permute.xlu0 0
        %1164 = vperm.xlu0 %1163, %v1062
        %v1165 = vpop.permute.xlu0 %1164
        %1168 = vset.pattern.permute.xlu0 0
        %1169 = vperm.xlu0 %1168, %v1063
        %v1170 = vpop.permute.xlu0 %1169
        %1173 = vset.pattern.permute.xlu0 0
        %1174 = vperm.xlu0 %1173, %v1064
        %v1175 = vpop.permute.xlu0 %1174
        %1178 = vset.pattern.permute.xlu0 0
        %1179 = vperm.xlu0 %1178, %v1065
        %v1180 = vpop.permute.xlu0 %1179
        %1183 = vset.pattern.permute.xlu0 0
        %1184 = vperm.xlu0 %1183, %v1066
        %v1185 = vpop.permute.xlu0 %1184
        %1188 = vset.pattern.permute.xlu0 0
        %1189 = vperm.xlu0 %1188, %v1067
        %v1190 = vpop.permute.xlu0 %1189
        %1193 = vset.pattern.permute.xlu0 0
        %1194 = vperm.xlu0 %1193, %v1068
        %v1195 = vpop.permute.xlu0 %1194
        %1198 = vset.pattern.permute.xlu0 0
        %1199 = vperm.xlu0 %1198, %v1069
        %v1200 = vpop.permute.xlu0 %1199
        %1203 = vset.pattern.permute.xlu0 0
        %1204 = vperm.xlu0 %1203, %v1070
        %v1205 = vpop.permute.xlu0 %1204
        %1208 = vset.pattern.permute.xlu0 0
        %1209 = vperm.xlu0 %1208, %v1071
        %v1210 = vpop.permute.xlu0 %1209
        %1213 = vset.pattern.permute.xlu0 0
        %1214 = vperm.xlu0 %1213, %v1072
        %v1215 = vpop.permute.xlu0 %1214
        %1218 = vset.pattern.permute.xlu0 0
        %1219 = vperm.xlu0 %1218, %v1073
        %v1220 = vpop.permute.xlu0 %1219
        %1223 = vset.pattern.permute.xlu0 0
        %1224 = vperm.xlu0 %1223, %v1074
        %v1225 = vpop.permute.xlu0 %1224
        %1228 = vset.pattern.permute.xlu0 0
        %1229 = vperm.xlu0 %1228, %v1075
        %v1230 = vpop.permute.xlu0 %1229
        %1233 = vset.pattern.permute.xlu0 0
        %1234 = vperm.xlu0 %1233, %v1076
        %v1235 = vpop.permute.xlu0 %1234
        %1238 = vset.pattern.permute.xlu0 0
        %1239 = vperm.xlu0 %1238, %v1077
        %v1240 = vpop.permute.xlu0 %1239
        %1243 = vset.pattern.permute.xlu0 0
        %1244 = vperm.xlu0 %1243, %v1078
        %v1245 = vpop.permute.xlu0 %1244
        %1248 = vset.pattern.permute.xlu0 0
        %1249 = vperm.xlu0 %1248, %v1079
        %v1250 = vpop.permute.xlu0 %1249
        %1253 = vset.pattern.permute.xlu0 0
        %1254 = vperm.xlu0 %1253, %v1080
        %v1255 = vpop.permute.xlu0 %1254
        %1258 = vset.pattern.permute.xlu0 0
        %1259 = vperm.xlu0 %1258, %v1081
        %v1260 = vpop.permute.xlu0 %1259
        %1263 = vset.pattern.permute.xlu0 0
        %1264 = vperm.xlu0 %1263, %v1082
        %v1265 = vpop.permute.xlu0 %1264
        %1268 = vset.pattern.permute.xlu0 0
        %1269 = vperm.xlu0 %1268, %v1083
        %v1270 = vpop.permute.xlu0 %1269
        %1273 = vset.pattern.permute.xlu0 0
        %1274 = vperm.xlu0 %1273, %v1084
        %v1275 = vpop.permute.xlu0 %1274
        %1278 = vset.pattern.permute.xlu0 0
        %1279 = vperm.xlu0 %1278, %v1085
        %v1280 = vpop.permute.xlu0 %1279
        %1283 = vset.pattern.permute.xlu0 0
        %1284 = vperm.xlu0 %1283, %v1086
        %v1285 = vpop.permute.xlu0 %1284
        %1288 = vset.pattern.permute.xlu0 0
        %1289 = vperm.xlu0 %1288, %v1087
        %v1290 = vpop.permute.xlu0 %1289
        %1293 = vset.pattern.permute.xlu0 0
        %1294 = vperm.xlu0 %1293, %v1088
        %v1295 = vpop.permute.xlu0 %1294
        %1298 = vset.pattern.permute.xlu0 0
        %1299 = vperm.xlu0 %1298, %v1089
        %v1300 = vpop.permute.xlu0 %1299
        %1303 = vset.pattern.permute.xlu0 0
        %1304 = vperm.xlu0 %1303, %v1090
        %v1305 = vpop.permute.xlu0 %1304
        %1308 = vset.pattern.permute.xlu0 0
        %1309 = vperm.xlu0 %1308, %v1091
        %v1310 = vpop.permute.xlu0 %1309
        %1313 = vset.pattern.permute.xlu0 0
        %1314 = vperm.xlu0 %1313, %v1092
        %v1315 = vpop.permute.xlu0 %1314
        %1318 = vset.pattern.permute.xlu0 0
        %1319 = vperm.xlu0 %1318, %v1093
        %v1320 = vpop.permute.xlu0 %1319
        %1323 = vset.pattern.permute.xlu0 0
        %1324 = vperm.xlu0 %1323, %v1094
        %v1325 = vpop.permute.xlu0 %1324
        %1328 = vset.pattern.permute.xlu0 0
        %1329 = vperm.xlu0 %1328, %v1095
        %v1330 = vpop.permute.xlu0 %1329
        %1333 = vset.pattern.permute.xlu0 0
        %1334 = vperm.xlu0 %1333, %v1096
        %v1335 = vpop.permute.xlu0 %1334
        %1338 = vset.pattern.permute.xlu0 0
        %1339 = vperm.xlu0 %1338, %v1097
        %v1340 = vpop.permute.xlu0 %1339
        %1343 = vset.pattern.permute.xlu0 0
        %1344 = vperm.xlu0 %1343, %v1098
        %v1345 = vpop.permute.xlu0 %1344
        %1348 = vset.pattern.permute.xlu0 0
        %1349 = vperm.xlu0 %1348, %v1099
        %v1350 = vpop.permute.xlu0 %1349
        %1353 = vset.pattern.permute.xlu0 0
        %1354 = vperm.xlu0 %1353, %v1100
        %v1355 = vpop.permute.xlu0 %1354
        %1358 = vset.pattern.permute.xlu0 0
        %1359 = vperm.xlu0 %1358, %v1101
        %v1360 = vpop.permute.xlu0 %1359
        %1363 = vset.pattern.permute.xlu0 0
        %1364 = vperm.xlu0 %1363, %v1102
        %v1365 = vpop.permute.xlu0 %1364
        %1368 = vset.pattern.permute.xlu0 0
        %1369 = vperm.xlu0 %1368, %v1103
        %v1370 = vpop.permute.xlu0 %1369
        %1373 = vset.pattern.permute.xlu0 0
        %1374 = vperm.xlu0 %1373, %v1104
        %v1375 = vpop.permute.xlu0 %1374
        %1378 = vset.pattern.permute.xlu0 0
        %1379 = vperm.xlu0 %1378, %v1105
        %v1380 = vpop.permute.xlu0 %1379
        %1383 = vset.pattern.permute.xlu0 0
        %1384 = vperm.xlu0 %1383, %v1106
        %v1385 = vpop.permute.xlu0 %1384
        %1388 = vset.pattern.permute.xlu0 0
        %1389 = vperm.xlu0 %1388, %v1107
        %v1390 = vpop.permute.xlu0 %1389
        %1393 = vset.pattern.permute.xlu0 0
        %1394 = vperm.xlu0 %1393, %v1108
        %v1395 = vpop.permute.xlu0 %1394
        %1398 = vset.pattern.permute.xlu0 0
        %1399 = vperm.xlu0 %1398, %v1109
        %v1400 = vpop.permute.xlu0 %1399
        %1403 = vset.pattern.permute.xlu0 0
        %1404 = vperm.xlu0 %1403, %v1110
        %v1405 = vpop.permute.xlu0 %1404
        %1408 = vset.pattern.permute.xlu0 0
        %1409 = vperm.xlu0 %1408, %v1111
        %v1410 = vpop.permute.xlu0 %1409
        %1413 = vset.pattern.permute.xlu0 0
        %1414 = vperm.xlu0 %1413, %v1112
        %v1415 = vpop.permute.xlu0 %1414
        %1418 = vset.pattern.permute.xlu0 0
        %1419 = vperm.xlu0 %1418, %v1113
        %v1420 = vpop.permute.xlu0 %1419
        %1423 = vset.pattern.permute.xlu0 0
        %1424 = vperm.xlu0 %1423, %v1114
        %v1425 = vpop.permute.xlu0 %1424
        %1428 = vset.pattern.permute.xlu0 0
        %1429 = vperm.xlu0 %1428, %v1115
        %v1430 = vpop.permute.xlu0 %1429
        %1433 = vset.pattern.permute.xlu0 0
        %1434 = vperm.xlu0 %1433, %v1116
        %v1435 = vpop.permute.xlu0 %1434
        %1438 = vset.pattern.permute.xlu0 0
        %1439 = vperm.xlu0 %1438, %v1117
        %v1440 = vpop.permute.xlu0 %1439
        %1443 = vset.pattern.permute.xlu0 0
        %1444 = vperm.xlu0 %1443, %v1118
        %v1445 = vpop.permute.xlu0 %1444
        %1448 = vset.pattern.permute.xlu0 0
        %1449 = vperm.xlu0 %1448, %v1119
        %v1450 = vpop.permute.xlu0 %1449
        %1453 = vset.pattern.permute.xlu0 0
        %1454 = vperm.xlu0 %1453, %v1120
        %v1455 = vpop.permute.xlu0 %1454
        %1458 = vset.pattern.permute.xlu0 0
        %1459 = vperm.xlu0 %1458, %v1121
        %v1460 = vpop.permute.xlu0 %1459
        %1463 = vset.pattern.permute.xlu0 0
        %1464 = vperm.xlu0 %1463, %v1122
        %v1465 = vpop.permute.xlu0 %1464
        %1468 = vset.pattern.permute.xlu0 0
        %1469 = vperm.xlu0 %1468, %v1123
        %v1470 = vpop.permute.xlu0 %1469
        %1473 = vset.pattern.permute.xlu0 0
        %1474 = vperm.xlu0 %1473, %v1124
        %v1475 = vpop.permute.xlu0 %1474
        %1478 = vset.pattern.permute.xlu0 0
        %1479 = vperm.xlu0 %1478, %v1125
        %v1480 = vpop.permute.xlu0 %1479
        %1483 = vset.pattern.permute.xlu0 0
        %1484 = vperm.xlu0 %1483, %v1126
        %v1485 = vpop.permute.xlu0 %1484
        %v1487 = vmul.f32 %v983, %v1130
        %v1488 = vmul.f32 %v984, %v1135
        %v1489 = vmul.f32 %v985, %v1140
        %v1490 = vmul.f32 %v986, %v1145
        %v1491 = vmul.f32 %v987, %v1150
        %v1492 = vmul.f32 %v988, %v1155
        %v1493 = vmul.f32 %v989, %v1160
        %v1494 = vmul.f32 %v990, %v1165
        %v1495 = vmul.f32 %v991, %v1170
        %v1496 = vmul.f32 %v992, %v1175
        %v1497 = vmul.f32 %v993, %v1180
        %v1498 = vmul.f32 %v994, %v1185
        %v1499 = vmul.f32 %v995, %v1190
        %v1500 = vmul.f32 %v996, %v1195
        %v1501 = vmul.f32 %v997, %v1200
        %v1502 = vmul.f32 %v998, %v1205
        %v1503 = vmul.f32 %v999, %v1210
        %v1504 = vmul.f32 %v1000, %v1215
        %v1505 = vmul.f32 %v1001, %v1220
        %v1506 = vmul.f32 %v1002, %v1225
        %v1507 = vmul.f32 %v1003, %v1230
        %v1508 = vmul.f32 %v1004, %v1235
        %v1509 = vmul.f32 %v1005, %v1240
        %v1510 = vmul.f32 %v1006, %v1245
        %v1511 = vmul.f32 %v1007, %v1250
        %v1512 = vmul.f32 %v1008, %v1255
        %v1513 = vmul.f32 %v1009, %v1260
        %v1514 = vmul.f32 %v1010, %v1265
        %v1515 = vmul.f32 %v1011, %v1270
        %v1516 = vmul.f32 %v1012, %v1275
        %v1517 = vmul.f32 %v1013, %v1280
        %v1518 = vmul.f32 %v1014, %v1285
        %v1519 = vmul.f32 %v1015, %v1290
        %v1520 = vmul.f32 %v1016, %v1295
        %v1521 = vmul.f32 %v1017, %v1300
        %v1522 = vmul.f32 %v1018, %v1305
        %v1523 = vmul.f32 %v1019, %v1310
        %v1524 = vmul.f32 %v1020, %v1315
        %v1525 = vmul.f32 %v1021, %v1320
        %v1526 = vmul.f32 %v1022, %v1325
        %v1527 = vmul.f32 %v1023, %v1330
        %v1528 = vmul.f32 %v1024, %v1335
        %v1529 = vmul.f32 %v1025, %v1340
        %v1530 = vmul.f32 %v1026, %v1345
        %v1531 = vmul.f32 %v1027, %v1350
        %v1532 = vmul.f32 %v1028, %v1355
        %v1533 = vmul.f32 %v1029, %v1360
        %v1534 = vmul.f32 %v1030, %v1365
        %v1535 = vmul.f32 %v1031, %v1370
        %v1536 = vmul.f32 %v1032, %v1375
        %v1537 = vmul.f32 %v1033, %v1380
        %v1538 = vmul.f32 %v1034, %v1385
        %v1539 = vmul.f32 %v1035, %v1390
        %v1540 = vmul.f32 %v1036, %v1395
        %v1541 = vmul.f32 %v1037, %v1400
        %v1542 = vmul.f32 %v1038, %v1405
        %v1543 = vmul.f32 %v1039, %v1410
        %v1544 = vmul.f32 %v1040, %v1415
        %v1545 = vmul.f32 %v1041, %v1420
        %v1546 = vmul.f32 %v1042, %v1425
        %v1547 = vmul.f32 %v1043, %v1430
        %v1548 = vmul.f32 %v1044, %v1435
        %v1549 = vmul.f32 %v1045, %v1440
        %v1550 = vmul.f32 %v1046, %v1445
        %v1551 = vmul.f32 %v1047, %v1450
        %v1552 = vmul.f32 %v1048, %v1455
        %v1553 = vmul.f32 %v1049, %v1460
        %v1554 = vmul.f32 %v1050, %v1465
        %v1555 = vmul.f32 %v1051, %v1470
        %v1556 = vmul.f32 %v1052, %v1475
        %v1557 = vmul.f32 %v1053, %v1480
        %v1558 = vmul.f32 %v1054, %v1485
        %v1559 = vld [vmem:[%s4] sm:$0xff]
        %v1560 = vld [vmem:[%s4 + $0x8] sm:$0x1]
        %v1561 = vperm.slane %v1559, 0
        %v1562 = vmul.f32 %v1487, %v1561
        %v1563 = vmul.f32 %v1488, %v1561
        %v1564 = vmul.f32 %v1489, %v1561
        %v1565 = vmul.f32 %v1490, %v1561
        %v1566 = vmul.f32 %v1491, %v1561
        %v1567 = vmul.f32 %v1492, %v1561
        %v1568 = vmul.f32 %v1493, %v1561
        %v1569 = vmul.f32 %v1494, %v1561
        %v1570 = vperm.slane %v1559, 1
        %v1571 = vmul.f32 %v1495, %v1570
        %v1572 = vmul.f32 %v1496, %v1570
        %v1573 = vmul.f32 %v1497, %v1570
        %v1574 = vmul.f32 %v1498, %v1570
        %v1575 = vmul.f32 %v1499, %v1570
        %v1576 = vmul.f32 %v1500, %v1570
        %v1577 = vmul.f32 %v1501, %v1570
        %v1578 = vmul.f32 %v1502, %v1570
        %v1579 = vadd.f32 %v1562, %v1571
        %v1580 = vadd.f32 %v1563, %v1572
        %v1581 = vadd.f32 %v1564, %v1573
        %v1582 = vadd.f32 %v1565, %v1574
        %v1583 = vadd.f32 %v1566, %v1575
        %v1584 = vadd.f32 %v1567, %v1576
        %v1585 = vadd.f32 %v1568, %v1577
        %v1586 = vadd.f32 %v1569, %v1578
        %v1587 = vperm.slane %v1559, 2
        %v1588 = vmul.f32 %v1503, %v1587
        %v1589 = vmul.f32 %v1504, %v1587
        %v1590 = vmul.f32 %v1505, %v1587
        %v1591 = vmul.f32 %v1506, %v1587
        %v1592 = vmul.f32 %v1507, %v1587
        %v1593 = vmul.f32 %v1508, %v1587
        %v1594 = vmul.f32 %v1509, %v1587
        %v1595 = vmul.f32 %v1510, %v1587
        %v1596 = vadd.f32 %v1579, %v1588
        %v1597 = vadd.f32 %v1580, %v1589
        %v1598 = vadd.f32 %v1581, %v1590
        %v1599 = vadd.f32 %v1582, %v1591
        %v1600 = vadd.f32 %v1583, %v1592
        %v1601 = vadd.f32 %v1584, %v1593
        %v1602 = vadd.f32 %v1585, %v1594
        %v1603 = vadd.f32 %v1586, %v1595
        %v1604 = vperm.slane %v1559, 3
        %v1605 = vmul.f32 %v1511, %v1604
        %v1606 = vmul.f32 %v1512, %v1604
        %v1607 = vmul.f32 %v1513, %v1604
        %v1608 = vmul.f32 %v1514, %v1604
        %v1609 = vmul.f32 %v1515, %v1604
        %v1610 = vmul.f32 %v1516, %v1604
        %v1611 = vmul.f32 %v1517, %v1604
        %v1612 = vmul.f32 %v1518, %v1604
        %v1613 = vadd.f32 %v1596, %v1605
        %v1614 = vadd.f32 %v1597, %v1606
        %v1615 = vadd.f32 %v1598, %v1607
        %v1616 = vadd.f32 %v1599, %v1608
        %v1617 = vadd.f32 %v1600, %v1609
        %v1618 = vadd.f32 %v1601, %v1610
        %v1619 = vadd.f32 %v1602, %v1611
        %v1620 = vadd.f32 %v1603, %v1612
        %v1621 = vperm.slane %v1559, 4
        %v1622 = vmul.f32 %v1519, %v1621
        %v1623 = vmul.f32 %v1520, %v1621
        %v1624 = vmul.f32 %v1521, %v1621
        %v1625 = vmul.f32 %v1522, %v1621
        %v1626 = vmul.f32 %v1523, %v1621
        %v1627 = vmul.f32 %v1524, %v1621
        %v1628 = vmul.f32 %v1525, %v1621
        %v1629 = vmul.f32 %v1526, %v1621
        %v1630 = vadd.f32 %v1613, %v1622
        %v1631 = vadd.f32 %v1614, %v1623
        %v1632 = vadd.f32 %v1615, %v1624
        %v1633 = vadd.f32 %v1616, %v1625
        %v1634 = vadd.f32 %v1617, %v1626
        %v1635 = vadd.f32 %v1618, %v1627
        %v1636 = vadd.f32 %v1619, %v1628
        %v1637 = vadd.f32 %v1620, %v1629
        %v1638 = vperm.slane %v1559, 5
        %v1639 = vmul.f32 %v1527, %v1638
        %v1640 = vmul.f32 %v1528, %v1638
        %v1641 = vmul.f32 %v1529, %v1638
        %v1642 = vmul.f32 %v1530, %v1638
        %v1643 = vmul.f32 %v1531, %v1638
        %v1644 = vmul.f32 %v1532, %v1638
        %v1645 = vmul.f32 %v1533, %v1638
        %v1646 = vmul.f32 %v1534, %v1638
        %v1647 = vadd.f32 %v1630, %v1639
        %v1648 = vadd.f32 %v1631, %v1640
        %v1649 = vadd.f32 %v1632, %v1641
        %v1650 = vadd.f32 %v1633, %v1642
        %v1651 = vadd.f32 %v1634, %v1643
        %v1652 = vadd.f32 %v1635, %v1644
        %v1653 = vadd.f32 %v1636, %v1645
        %v1654 = vadd.f32 %v1637, %v1646
        %v1655 = vperm.slane %v1559, 6
        %v1656 = vmul.f32 %v1535, %v1655
        %v1657 = vmul.f32 %v1536, %v1655
        %v1658 = vmul.f32 %v1537, %v1655
        %v1659 = vmul.f32 %v1538, %v1655
        %v1660 = vmul.f32 %v1539, %v1655
        %v1661 = vmul.f32 %v1540, %v1655
        %v1662 = vmul.f32 %v1541, %v1655
        %v1663 = vmul.f32 %v1542, %v1655
        %v1664 = vadd.f32 %v1647, %v1656
        %v1665 = vadd.f32 %v1648, %v1657
        %v1666 = vadd.f32 %v1649, %v1658
        %v1667 = vadd.f32 %v1650, %v1659
        %v1668 = vadd.f32 %v1651, %v1660
        %v1669 = vadd.f32 %v1652, %v1661
        %v1670 = vadd.f32 %v1653, %v1662
        %v1671 = vadd.f32 %v1654, %v1663
        %v1672 = vperm.slane %v1559, 7
        %v1673 = vmul.f32 %v1543, %v1672
        %v1674 = vmul.f32 %v1544, %v1672
        %v1675 = vmul.f32 %v1545, %v1672
        %v1676 = vmul.f32 %v1546, %v1672
        %v1677 = vmul.f32 %v1547, %v1672
        %v1678 = vmul.f32 %v1548, %v1672
        %v1679 = vmul.f32 %v1549, %v1672
        %v1680 = vmul.f32 %v1550, %v1672
        %v1681 = vadd.f32 %v1664, %v1673
        %v1682 = vadd.f32 %v1665, %v1674
        %v1683 = vadd.f32 %v1666, %v1675
        %v1684 = vadd.f32 %v1667, %v1676
        %v1685 = vadd.f32 %v1668, %v1677
        %v1686 = vadd.f32 %v1669, %v1678
        %v1687 = vadd.f32 %v1670, %v1679
        %v1688 = vadd.f32 %v1671, %v1680
        %v1689 = vperm.slane %v1560, 0
        %v1690 = vmul.f32 %v1551, %v1689
        %v1691 = vmul.f32 %v1552, %v1689
        %v1692 = vmul.f32 %v1553, %v1689
        %v1693 = vmul.f32 %v1554, %v1689
        %v1694 = vmul.f32 %v1555, %v1689
        %v1695 = vmul.f32 %v1556, %v1689
        %v1696 = vmul.f32 %v1557, %v1689
        %v1697 = vmul.f32 %v1558, %v1689
        %v1698 = vadd.f32 %v1681, %v1690
        %v1699 = vadd.f32 %v1682, %v1691
        %v1700 = vadd.f32 %v1683, %v1692
        %v1701 = vadd.f32 %v1684, %v1693
        %v1702 = vadd.f32 %v1685, %v1694
        %v1703 = vadd.f32 %v1686, %v1695
        %v1704 = vadd.f32 %v1687, %v1696
        %v1705 = vadd.f32 %v1688, %v1697
        %v1706 = vld [vmem:[%s5] sm:$0x1]
        %v1708 = vperm.slane %v1706, 0
        %v1710 = vadd.f32 %v1698, %v1708
        %v1711 = vadd.f32 %v1699, %v1708
        %v1712 = vadd.f32 %v1700, %v1708
        %v1713 = vadd.f32 %v1701, %v1708
        %v1714 = vadd.f32 %v1702, %v1708
        %v1715 = vadd.f32 %v1703, %v1708
        %v1716 = vadd.f32 %v1704, %v1708
        %v1717 = vadd.f32 %v1705, %v1708
        %v1718 = vmax.f32 %v1710, 0.0
        %v1719 = vmax.f32 %v1711, 0.0
        %v1720 = vmax.f32 %v1712, 0.0
        %v1721 = vmax.f32 %v1713, 0.0
        %v1722 = vmax.f32 %v1714, 0.0
        %v1723 = vmax.f32 %v1715, 0.0
        %v1724 = vmax.f32 %v1716, 0.0
        %v1725 = vmax.f32 %v1717, 0.0
        %v1726 = vpack.c.bf16 %v1719, %v1718
        %v1727 = vpack.c.bf16 %v1721, %v1720
        %v1728 = vpack.c.bf16 %v1723, %v1722
        %v1729 = vpack.c.bf16 %v1725, %v1724
        %v1730 = vld [vmem:[%s6] sm:$0xf]
        %v1731 = vld [vmem:[%s6 + $0x4] sm:$0xf]
        %v1732 = vld [vmem:[%s6 + $0x8] sm:$0xf]
        %v1733 = vld [vmem:[%s6 + $0xc] sm:$0xf]
        %v1734 = vld [vmem:[%s7] sm:$0x1]
        %v1736 = vperm.slane %v1734, 0
        %v1742 = vunpack.c.l.b16 %v1730
        %v1743 = vunpack.c.l.b16 %v1731
        %v1744 = vunpack.c.l.b16 %v1732
        %v1745 = vunpack.c.l.b16 %v1733
        %v1746 = vpack.c.b16 %v1743, %v1742
        %v1747 = vpack.c.b16 %v1745, %v1744
        %v1751 = vsel %vm685, %v1726, 0
        %v1754 = vsel %vm685, %v1727, 0
        %v1757 = vsel %vm685, %v1728, 0
        %v1760 = vsel %vm685, %v1729, 0
        %1762 = vmatpush.bf16.msra.mxu0 0
        %1763 = vmatpush.bf16.msra.mxu0 0
        %1764 = vmatpush.bf16.msra.mxu0 0
        %1765 = vmatpush.bf16.msra.mxu0 0
        %1766 = vmatpush.bf16.msra.mxu0 0
        %1767 = vmatpush.bf16.msra.mxu0 0
        %1768 = vmatpush.bf16.msra.mxu0 %v1747
        %1769 = vmatpush.bf16.msra.mxu0 %v1746
        %1770 = vmatmul.bf16.gmra.mxu0 %v1751
        %v1771 = vpop.f32.mrf.mxu0
        %v1772 = vadd.f32 %v1736, %v1771
        %v1773 = vpop.f32.mrf.mxu0
        %v1774 = vadd.f32 %v1736, %v1773
        %1775 = vmatmul.bf16.gmra.mxu0 %v1754
        %v1776 = vpop.f32.mrf.mxu0
        %v1777 = vpop.f32.mrf.mxu0
        %v1778 = vadd.f32 %v1736, %v1777
        %1779 = vmatmul.bf16.gmra.mxu0 %v1757
        %v1780 = vpop.f32.mrf.mxu0
        %v1781 = vadd.f32 %v1736, %v1780
        %v1782 = vpop.f32.mrf.mxu0
        %v1783 = vadd.f32 %v1736, %v1782
        %1784 = vmatmul.bf16.gmra.mxu0 %v1760
        %v1785 = vpop.f32.mrf.mxu0
        %v1786 = vpop.f32.mrf.mxu0
        %1787 = vdwg.mxu0
        %v1788 = vmax.f32 %v1772, 0.0
        %v1789 = vmax.f32 %v1774, 0.0
        %v1790 = vmax.f32 %v1778, 0.0
        %v1791 = vmax.f32 %v1781, 0.0
        %v1792 = vmax.f32 %v1783, 0.0
        %v1793 = vld [vmem:[%s8] sm:$0xff]
        %v1794 = vld [vmem:[%s8 + $0x8] sm:$0x1]
        %v1796 = vrot.slane %v1793, 4
        %v1798 = vmul.f32 %v1788, %v1796
        %v1800 = vrot.slane %v1798, 1
        %v1802 = vadd.f32 %v1798, %v1800
        %v1803 = vrot.slane %v1793, 7
        %v1805 = vmul.f32 %v1789, %v1803
        %v1806 = vadd.f32 %v1802, %v1805
        %v1808 = vrot.slane %v1794, 7
        %v1810 = vmul.f32 %v1789, %v1808
        %v1812 = vrot.slane %v1810, 1
        %v1814 = vadd.f32 %v1806, %v1812
        %v1815 = vmul.f32 %v1788, %v1793
        %v1817 = vrot.slane %v1815, 1
        %v1819 = vadd.f32 %v1815, %v1817
        %v1820 = vrot.slane %v1815, 2
        %v1822 = vadd.f32 %v1819, %v1820
        %v1823 = vrot.slane %v1793, 3
        %v1825 = vmul.f32 %v1789, %v1823
        %v1826 = vadd.f32 %v1822, %v1825
        %v1828 = vrot.slane %v1825, 1
        %v1830 = vadd.f32 %v1826, %v1828
        %v1831 = vrot.slane %v1794, 3
        %v1833 = vmul.f32 %v1789, %v1831
        %v1835 = vrot.slane %v1833, 2
        %v1837 = vadd.f32 %v1830, %v1835
        %v1838 = vrot.slane %v1793, 1
        %v1840 = vmul.f32 %v1790, %v1838
        %v1842 = vrot.slane %v1840, 1
        %v1844 = vadd.f32 %v1840, %v1842
        %v1845 = vmul.f32 %v1791, %v1796
        %v1846 = vadd.f32 %v1844, %v1845
        %v1848 = vrot.slane %v1845, 1
        %v1850 = vadd.f32 %v1846, %v1848
        %v1851 = vmul.f32 %v1792, %v1803
        %v1852 = vadd.f32 %v1850, %v1851
        %v1853 = vmul.f32 %v1792, %v1808
        %v1855 = vrot.slane %v1853, 1
        %v1857 = vadd.f32 %v1852, %v1855
        %v1858 = vrot.slane %v1793, 5
        %v1860 = vmul.f32 %v1790, %v1858
        %v1862 = vrot.slane %v1860, 1
        %v1864 = vadd.f32 %v1860, %v1862
        %v1865 = vrot.slane %v1860, 2
        %v1867 = vadd.f32 %v1864, %v1865
        %v1868 = vmul.f32 %v1791, %v1793
        %v1869 = vadd.f32 %v1867, %v1868
        %v1871 = vrot.slane %v1868, 1
        %v1873 = vadd.f32 %v1869, %v1871
        %v1874 = vrot.slane %v1868, 2
        %v1876 = vadd.f32 %v1873, %v1874
        %v1877 = vmul.f32 %v1792, %v1823
        %v1878 = vadd.f32 %v1876, %v1877
        %v1880 = vrot.slane %v1877, 1
        %v1882 = vadd.f32 %v1878, %v1880
        %v1883 = vmul.f32 %v1792, %v1831
        %v1885 = vrot.slane %v1883, 2
        %v1887 = vadd.f32 %v1882, %v1885
        %v1889 = vrot.slane %v1837, 2
        %v1892 = vrot.slane %v1857, 6
        %vm1894 = vcmask 1040384
        %v1895 = vsel %vm1894, %v1814, %v1889
        %vm1896 = vcmask 1041408
        %v1897 = vsel %vm1896, %v1895, %v1892
        %vm1898 = vcmask 1042432
        %v1899 = vsel %vm1898, %v1897, %v1887
        %v1900 = vld [vmem:[%s9] sm:$0x1]
        %v1902 = vperm.slane %v1900, 0
        %v1904 = vadd.f32 %v1899, %v1902
        %v1905 = vmax.f32 %v1904, 0.0
        %v1906 = vpack.c.bf16 %v1905, %v1905
        %v1907 = vld [vmem:[%s10] sm:$0xf]
        %v1908 = vld [vmem:[%s10 + $0x4] sm:$0xf]
        %v1909 = vld [vmem:[%s10 + $0x8] sm:$0xf]
        %v1910 = vld [vmem:[%s10 + $0xc] sm:$0xf]
        %v1911 = vld [vmem:[%s10 + $0x10] sm:$0xf]
        %v1912 = vld [vmem:[%s10 + $0x14] sm:$0xf]
        %v1913 = vld [vmem:[%s11] sm:$0x1]
        %v1915 = vperm.slane %v1913, 0
        %v1923 = vunpack.c.l.b16 %v1907
        %v1924 = vunpack.c.l.b16 %v1908
        %v1925 = vunpack.c.l.b16 %v1909
        %v1926 = vunpack.c.l.b16 %v1910
        %v1927 = vunpack.c.l.b16 %v1911
        %v1928 = vunpack.c.l.b16 %v1912
        %v1929 = vpack.c.b16 %v1924, %v1923
        %v1930 = vpack.c.b16 %v1926, %v1925
        %v1931 = vpack.c.b16 %v1928, %v1927
        %vm1935 = vcmask 392192
        %v1937 = vsel %vm1935, %v1906, 0
        %1939 = vmatpush.bf16.msra.mxu0 0
        %1940 = vmatpush.bf16.msra.mxu0 0
        %1941 = vmatpush.bf16.msra.mxu0 0
        %1942 = vmatpush.bf16.msra.mxu0 0
        %1943 = vmatpush.bf16.msra.mxu0 0
        %1944 = vmatpush.bf16.msra.mxu0 %v1931
        %1945 = vmatpush.bf16.msra.mxu0 %v1930
        %1946 = vmatpush.bf16.msra.mxu0 %v1929
        %1947 = vmatmul.bf16.gmra.mxu0 %v1937
        %v1948 = vpop.f32.mrf.mxu0
        %v1949 = vadd.f32 %v1915, %v1948
        %v1950 = vpop.f32.mrf.mxu0
        %1951 = vdwg.mxu0
        %v1952 = vmax.f32 %v1949, 0.0
        %vm1953 = vcmask 519168
        %1954 = vst.msk [vmem:[%s406] sm:$0xf] %vm1953, %v1952
        %s1955 = sand.u32 %s291, 1
        %s1956 = scalar_lea.sflag [#allocation3], %s1955
        %s1957 = sand.u32 %s291, 1
        %s1958 = smul.addr %s1957, 4
        %s1959 = scalar_lea.vmem [#allocation2], %s1958
        // Predicated region
        $region69: #{learning_to_downsample.1} parent=67 // pred_check
          %p1960 = pneg %p301
        $region70: #{learning_to_downsample.1} parent=67 // pred_check_branch
          %1962 = sbr.rel (%p1960) target = $region72
        $region71: #{learning_to_downsample.1} parent=67 // pred_region
          %1964 = vsyncadd %s1956, 0
          %s1965 = smul.addr %s26, 4
          %s1966 = scalar_lea.hbm %s12, %s1965
          %s1968 = sshll.u32 %s1959, 4
          %s1969 = int_to_ptr.vmem [resolvable:$true] %s1968
          %s1970 = sshll.u32 %s1966, 4
          %s1971 = int_to_ptr.hbm [resolvable:$true] %s1970
          %1973 = dma.vmem_to_hbm [thread:$0]  %s1969, 64, %s1971, %s1956
        $region72: #{learning_to_downsample.1} parent=67 // pred_fallthru
          _
      $region68: #{learning_to_downsample.1} parent=5 // pred_fallthru
        _
      %p1974 = scmp.le.s32.totalorder 2, %s21
      // Predicated region
      $region73: #{learning_to_downsample.1} parent=5 // pred_check
        %p1975 = pneg %p1974
      $region74: #{learning_to_downsample.1} parent=5 // pred_check_branch
        %1977 = sbr.rel (%p1975) target = $region76
      $region75: #{learning_to_downsample.1} parent=5 // pred_region
        %s1978 = ssub.s32 %s21, 2
        // Predicated region
        $region77: #{learning_to_downsample.1} parent=75 // pred_check
          %p1979 = pneg %p307
        $region78: #{learning_to_downsample.1} parent=75 // pred_check_branch
          %1981 = sbr.rel (%p1979) target = $region80
        $region79: #{learning_to_downsample.1} parent=75 // pred_region
          %s1982 = sand.u32 %s292, 1
          %s1983 = scalar_lea.sflag [#allocation3], %s1982
          %s1984 = sand.u32 %s292, 1
          %s1985 = smul.addr %s1984, 4
          %s1986 = scalar_lea.vmem [#allocation2], %s1985
          %1988 = dma.done %s1983, 64
        $region80: #{learning_to_downsample.1} parent=75 // pred_fallthru
          _
      $region76: #{learning_to_downsample.1} parent=5 // pred_fallthru
        _
    $region6: #{learning_to_downsample.1} parent=1 // loop_footer
      %s25 = sadd.s32 1, %s21
    $region7: #{learning_to_downsample.1} parent=1 // loop_footer_branch
      %20 = sbr.rel target = $region3
    $region8: #{learning_to_downsample.1} parent=1 // loop_exit
      _
    %1989 = vsyncpa [#allocation3], 1
    %s1990 = scalar_lea.sflag [#allocation3], 1
    %1991 = vsyncpa %s1990, 1

</llo_original>
